<compile_context>
chip_gen: v7x
topology: tpu7x:2x2x1
jax: 0.10.0
libtpu: 0.0.40
codegen_flags: <defaults>
</compile_context>

<pallas_src>
import functools
import numpy as np
import jax
import jax.numpy as jnp
from jax.experimental import pallas as pl
from jax.experimental.pallas import tpu as pltpu

# Only affects the f32 reference matmuls; kernel dots pass precision explicitly.
jax.config.update("jax_default_matmul_precision", "highest")

HIGHEST = jax.lax.Precision.HIGHEST
DEFAULT = jax.lax.Precision.DEFAULT
BF16 = jnp.bfloat16

# Scoped-VMEM budget for both kernels. Should be derived from actual block
# footprints per chip (v5e default 16 MiB, v6e 32 MiB, v7x 64 MiB physical).
VMEM_LIMIT_BYTES = 64 * 1024 * 1024


def _layernorm(x, w, b, eps=1e-5):
    mu = jnp.mean(x, axis=-1, keepdims=True)
    xc = x - mu
    var = jnp.mean(xc * xc, axis=-1, keepdims=True)
    return xc * jax.lax.rsqrt(var + eps) * w + b


# ----------------------------------------------------------------------------
# Transformer block kernel: one grid step == one batch element.
#   q/k weight columns are pre-permuted per head to [re_0..re_{h/2-1}, im_0..]
#   so rotary is pure elementwise VPU math on the two half-dim slices.
# ----------------------------------------------------------------------------
def _transformer_block_kernel(
    x_ref, cos_ref, sin_ref,
    wqkv_ref, bqkv_ref, wo_ref, bo_ref,
    wug_ref, bug_ref, wdn_ref, bdn_ref,
    lna_w_ref, lna_b_ref, lnb_w_ref, lnb_b_ref,
    out_ref, *, heads, head_dim,
):
    half = head_dim // 2
    x = x_ref[...]                              # (S, D) f32 residual stream
    S, D = x.shape
    xb = x.astype(BF16)

    # ---- fused lane-dense QKV projection: (S, D) @ (D, 3D), f32 accumulation
    qkv = jnp.dot(xb, wqkv_ref[...], precision=DEFAULT,
                  preferred_element_type=jnp.float32) + bqkv_ref[...]

    def to_heads(base):
        # (S, 3D) column window -> (heads, S, head_dim); trace-time unrolled
        # lane slices + leading-axis stack (layout only, no matmuls).
        return jnp.stack(
            [qkv[:, base + h * head_dim: base + (h + 1) * head_dim]
             for h in range(heads)], axis=0)

    q3 = to_heads(0)          # (heads, S, hd), per-head layout [re | im]
    k3 = to_heads(D)
    v3 = to_heads(2 * D)

    # ---- rotary: elementwise on the half slices, hoisted cos/sin broadcasts
    cosb = jnp.broadcast_to(cos_ref[...][None], (heads, S, half))
    sinb = jnp.broadcast_to(sin_ref[...][None], (heads, S, half))

    def rope(t):
        a = t[..., :half]                       # real parts (heads, S, half)
        b = t[..., half:]                       # imag parts
        # contiguous rotated head_dim buffer so scores contract full head_dim
        return jnp.concatenate([a * cosb - b * sinb,
                                a * sinb + b * cosb], axis=-1).astype(BF16)

    q_rot = rope(q3)
    k_rot = rope(k3)

    # ---- attention scores: single full-head_dim contraction per head
    scores = jax.lax.dot_general(
        q_rot, k_rot, (((2,), (2,)), ((0,), (0,))),
        precision=DEFAULT, preferred_element_type=jnp.float32)
    scores = scores * (1.0 / (head_dim ** 0.5))          # (heads, S, S)

    m = jnp.max(scores, axis=-1, keepdims=True)
    e = jnp.exp(scores - m)
    p = (e * pl.reciprocal(jnp.sum(e, axis=-1, keepdims=True),
                           approx=True)).astype(BF16)

    ctx = jax.lax.dot_general(                           # (heads, S, hd)
        p, v3.astype(BF16), (((2,), (1,)), ((0,), (0,))),
        precision=DEFAULT, preferred_element_type=jnp.float32)

    # ---- merge heads -> (S, D) and do ONE D-wide output projection
    ctx2d = jnp.concatenate([ctx[h] for h in range(heads)],
                            axis=-1).astype(BF16)        # (S, D)
    attn_o = jnp.dot(ctx2d, wo_ref[...], precision=DEFAULT,
                     preferred_element_type=jnp.float32) + bo_ref[...]

    # x = norm_a(attn(x)) + x
    h1 = _layernorm(attn_o, lna_w_ref[...], lna_b_ref[...]) + x

    # ---- FFN: fused up|gate matmul, then down(silu(up) * gate)
    # TODO(synk): K/N-tile wug/wdn over the 4D hidden dim for v7x 64 MiB VMEM.
    h1b = h1.astype(BF16)
    ug = jnp.dot(h1b, wug_ref[...], precision=DEFAULT,
                 preferred_element_type=jnp.float32) + bug_ref[...]
    dff = 4 * D
    up = ug[:, :dff]
    gate = ug[:, dff:]
    sig = pl.reciprocal(1.0 + jnp.exp(-up), approx=True)
    act = (up * sig * gate).astype(BF16)
    ff = jnp.dot(act, wdn_ref[...], precision=DEFAULT,
                 preferred_element_type=jnp.float32) + bdn_ref[...]

    # x = norm_b(ffn(h)) + h
    out_ref[...] = _layernorm(ff, lnb_w_ref[...], lnb_b_ref[...]) + h1


def transformer_block_pallas(x, cos, sin, kp, heads, head_dim):
    B, S, D = x.shape
    others = (cos, sin,
              kp['wqkv'], kp['bqkv'], kp['wo'], kp['bo'],
              kp['wug'], kp['bug'], kp['wdn'], kp['bdn'],
              kp['lna_w'], kp['lna_b'], kp['lnb_w'], kp['lnb_b'])

    def full_spec(a):
        # TODO(synk): pipeline_mode=pl.Buffered(1) to single-buffer these
        # constant-index weight blocks (halves weight VMEM footprint).
        return pl.BlockSpec(a.shape, lambda b: (0,) * a.ndim)

    in_specs = ([pl.BlockSpec((None, S, D), lambda b: (b, 0, 0))]
                + [full_spec(a) for a in others])
    out_specs = pl.BlockSpec((None, S, D), lambda b: (b, 0, 0))

    # TODO(synk): add a sequence-tile grid axis with flash-style K/V streaming
    # so (heads, S, S) scores are never fully resident for long S.
    return pl.pallas_call(
        functools.partial(_transformer_block_kernel, heads=heads,
                          head_dim=head_dim),
        out_shape=jax.ShapeDtypeStruct((B, S, D), jnp.float32),
        grid=(B,),
        in_specs=in_specs,
        out_specs=out_specs,
        compiler_params=pltpu.CompilerParams(
            dimension_semantics=("parallel",),
            vmem_limit_bytes=VMEM_LIMIT_BYTES),
    )(x, *others)


# ----------------------------------------------------------------------------
# LM head, two passes, NO f32 logits HBM round-trip:
#   pass 1: vocab-tiled online max/sum-exp stats (vocab axis MUST stay the
#           sequential "arbitrary" inner grid axis -- scratch carries the
#           running max/sum across vocab tiles).
#   pass 2: recompute the logits tile and write normalized probabilities.
# ----------------------------------------------------------------------------
def _lm_stats_kernel(x_ref, w_ref, b_ref, m_ref, l_ref, m_sc, l_sc):
    vi = pl.program_id(1)

    @pl.when(vi == 0)
    def _():
        m_sc[...] = jnp.full(m_sc.shape, -jnp.inf, jnp.float32)
        l_sc[...] = jnp.zeros(l_sc.shape, jnp.float32)

    logits = jnp.dot(x_ref[...], w_ref[...], precision=DEFAULT,
                     preferred_element_type=jnp.float32) + b_ref[...]

    m_prev = m_sc[...]
    m_new = jnp.maximum(m_prev, jnp.max(logits, axis=-1, keepdims=True))
    l_sc[...] = (l_sc[...] * jnp.exp(m_prev - m_new)
                 + jnp.sum(jnp.exp(logits - m_new), axis=-1, keepdims=True))
    m_sc[...] = m_new

    @pl.when(vi == pl.num_programs(1) - 1)
    def _():
        m_ref[...] = m_sc[...]
        l_ref[...] = l_sc[...]


def _lm_probs_kernel(x_ref, w_ref, b_ref, m_ref, l_ref, out_ref):
    logits = jnp.dot(x_ref[...], w_ref[...], precision=DEFAULT,
                     preferred_element_type=jnp.float32) + b_ref[...]
    out_ref[...] = (jnp.exp(logits - m_ref[...])
                    * pl.reciprocal(l_ref[...], approx=True))


def lm_head_pallas(x, w_bf16, b, tile_v=1024):
    B, S, D = x.shape
    V = w_bf16.shape[1]
    TV = min(V, tile_v)
    assert V % TV == 0
    nV = V // TV
    xb = x.astype(BF16)

    m, l = pl.pallas_call(
        _lm_stats_kernel,
        out_shape=(jax.ShapeDtypeStruct((B, S, 1), jnp.float32),
                   jax.ShapeDtypeStruct((B, S, 1), jnp.float32)),
        grid=(B, nV),
        in_specs=[pl.BlockSpec((None, S, D), lambda bi, vi: (bi, 0, 0)),
                  pl.BlockSpec((D, TV), lambda bi, vi: (0, vi)),
                  pl.BlockSpec((1, TV), lambda bi, vi: (0, vi))],
        out_specs=(pl.BlockSpec((None, S, 1), lambda bi, vi: (bi, 0, 0)),
                   pl.BlockSpec((None, S, 1), lambda bi, vi: (bi, 0, 0))),
        scratch_shapes=[pltpu.VMEM((S, 1), jnp.float32),
                        pltpu.VMEM((S, 1), jnp.float32)],
        compiler_params=pltpu.CompilerParams(
            # vocab axis must be sequential ("arbitrary") for the online stats.
            dimension_semantics=("parallel", "arbitrary"),
            vmem_limit_bytes=VMEM_LIMIT_BYTES),
    )(xb, w_bf16, b)

    return pl.pallas_call(
        _lm_probs_kernel,
        out_shape=jax.ShapeDtypeStruct((B, S, V), jnp.float32),
        grid=(B, nV),
        in_specs=[pl.BlockSpec((None, S, D), lambda bi, vi: (bi, 0, 0)),
                  pl.BlockSpec((D, TV), lambda bi, vi: (0, vi)),
                  pl.BlockSpec((1, TV), lambda bi, vi: (0, vi)),
                  pl.BlockSpec((None, S, 1), lambda bi, vi: (bi, 0, 0)),
                  pl.BlockSpec((None, S, 1), lambda bi, vi: (bi, 0, 0))],
        out_specs=pl.BlockSpec((None, S, TV), lambda bi, vi: (bi, 0, vi)),
        compiler_params=pltpu.CompilerParams(
            dimension_semantics=("parallel", "parallel"),
            vmem_limit_bytes=VMEM_LIMIT_BYTES),
    )(xb, w_bf16, b, m, l)


# ----------------------------------------------------------------------------
# Full model forward (Pallas). Token-embedding gather is plain-JAX glue.
# ----------------------------------------------------------------------------
def transformer_forward(tokens, emb, kblocks, khead, cos, sin, heads, head_dim):
    x = jnp.take(emb, tokens, axis=0)
    for kp in kblocks:
        x = transformer_block_pallas(x, cos, sin, kp, heads, head_dim)
    return lm_head_pallas(x, khead['lm_w'], khead['lm_b'])


# ----------------------------------------------------------------------------
# Parameter construction + kernel-side param prep (bf16 cast, fused QKV and
# up|gate weights, per-head de-interleave permutation of q/k columns so rotary
# is elementwise, lm_head weights cast to bf16 once).
# ----------------------------------------------------------------------------
def init_params(key, layers, heads, head_dim, vocab_size):
    D = heads * head_dim
    keys = jax.random.split(key, 3 + layers)

    def rnd(k, shape, scale=0.1):
        return jax.random.normal(k, shape, jnp.float32) * scale

    emb = rnd(keys[0], (vocab_size, D), 0.5)
    lm_w = rnd(keys[1], (D, vocab_size), 0.2)
    lm_b = rnd(keys[2], (1, vocab_size), 0.1)
    blocks = []
    for l in range(layers):
        ks = jax.random.split(keys[3 + l], 18)
        blocks.append(dict(
            wq=rnd(ks[0], (D, D)), bq=rnd(ks[1], (1, D), 0.02),
            wk=rnd(ks[2], (D, D)), bk=rnd(ks[3], (1, D), 0.02),
            wv=rnd(ks[4], (D, D)), bv=rnd(ks[5], (1, D), 0.02),
            wo=rnd(ks[6], (D, D)), bo=rnd(ks[7], (1, D), 0.02),
            wup=rnd(ks[8], (D, 4 * D)), bup=rnd(ks[9], (1, 4 * D), 0.02),
            wg=rnd(ks[10], (D, 4 * D)), bg=rnd(ks[11], (1, 4 * D), 0.02),
            wdn=rnd(ks[12], (4 * D, D)), bdn=rnd(ks[13], (1, D), 0.02),
            lna_w=1.0 + rnd(ks[14], (1, D), 0.05), lna_b=rnd(ks[15], (1, D), 0.02),
            lnb_w=1.0 + rnd(ks[16], (1, D), 0.05), lnb_b=rnd(ks[17], (1, D), 0.02),
        ))
    return dict(emb=emb, lm_w=lm_w, lm_b=lm_b, blocks=blocks)


def prep_kernel_params(params, heads, head_dim):
    """bf16 casts, fused QKV / up|gate weights, q/k column de-interleave."""
    D = heads * head_dim
    half = head_dim // 2
    perm_np = np.empty(D, np.int32)
    for h in range(heads):
        base = h * head_dim
        perm_np[base:base + half] = base + 2 * np.arange(half)
        perm_np[base + half:base + head_dim] = base + 2 * np.arange(half) + 1
    perm = jnp.asarray(perm_np)

    kblocks = []
    for p in params['blocks']:
        wq = p['wq'][:, perm]
        bq = p['bq'][:, perm]
        wk = p['wk'][:, perm]
        bk = p['bk'][:, perm]
        wqkv = jnp.concatenate([wq, wk, p['wv']], axis=1).astype(BF16)   # (D, 3D)
        bqkv = jnp.concatenate([bq, bk, p['bv']], axis=1)                # (1, 3D)
        wug = jnp.concatenate([p['wup'], p['wg']], axis=1).astype(BF16)  # (D, 8D)
        bug = jnp.concatenate([p['bup'], p['bg']], axis=1)               # (1, 8D)
        kblocks.append(dict(
            wqkv=wqkv, bqkv=bqkv,
            wo=p['wo'].astype(BF16), bo=p['bo'],
            wug=wug, bug=bug,
            wdn=p['wdn'].astype(BF16), bdn=p['bdn'],
            lna_w=p['lna_w'], lna_b=p['lna_b'],
            lnb_w=p['lnb_w'], lnb_b=p['lnb_b'],
        ))
    khead = dict(lm_w=params['lm_w'].astype(BF16), lm_b=params['lm_b'])
    return kblocks, khead


def rotary_tables(head_dim, end, theta=10000.0):
    half = head_dim // 2
    freqs = 1.0 / (theta ** (np.arange(0, head_dim, 2)[:half].astype(np.float32)
                             / head_dim))
    t = np.arange(end, dtype=np.float32)
    angles = np.outer(t, freqs).astype(np.float32)        # (end, half)
    freqs_cis = np.exp(1j * angles).astype(np.complex64)  # reference only
    return (jnp.asarray(np.cos(angles)), jnp.asarray(np.sin(angles)),
            jnp.asarray(freqs_cis))


# ----------------------------------------------------------------------------
# Pure-JAX f32 reference (complex rotary exactly like the PyTorch code).
# ----------------------------------------------------------------------------
def reference_forward(tokens, params, freqs_cis, head, head_dim):
    x = params['emb'][tokens]
    B, S, D = x.shape
    fc = freqs_cis[:S]
    for p in params['blocks']:
        q = x @ p['wq'] + p['bq'][0]
        k = x @ p['wk'] + p['bk'][0]
        v = x @ p['wv'] + p['bv'][0]
        q = q.reshape(B, S, head, head_dim)
        k = k.reshape(B, S, head, head_dim)
        v = v.reshape(B, S, head, head_dim)
        qc = jax.lax.complex(q[..., 0::2], q[..., 1::2]) * fc[None, :, None, :]
        kc = jax.lax.complex(k[..., 0::2], k[..., 1::2]) * fc[None, :, None, :]

        def to_real(c):
            return jnp.stack([jnp.real(c), jnp.imag(c)], axis=-1).reshape(
                B, S, head, head_dim)

        q = to_real(qc).transpose(0, 2, 1, 3)
        k = to_real(kc).transpose(0, 2, 1, 3)
        v = v.transpose(0, 2, 1, 3)
        scores = jnp.einsum('bhqd,bhkd->bhqk', q, k,
                            precision=HIGHEST) / np.sqrt(head_dim)
        attn = jax.nn.softmax(scores, axis=-1)
        o = jnp.einsum('bhqk,bhkd->bhqd', attn, v, precision=HIGHEST)
        o = o.transpose(0, 2, 1, 3).reshape(B, S, D)
        o = o @ p['wo'] + p['bo'][0]
        h1 = _layernorm(o, p['lna_w'][0], p['lna_b'][0]) + x
        up = h1 @ p['wup'] + p['bup'][0]
        gate = h1 @ p['wg'] + p['bg'][0]
        ff = (jax.nn.silu(up) * gate) @ p['wdn'] + p['bdn'][0]
        x = _layernorm(ff, p['lnb_w'][0], p['lnb_b'][0]) + h1
    logits = x @ params['lm_w'] + params['lm_b'][0]
    return jax.nn.softmax(logits, axis=-1)


if __name__ == "__main__":
    layers, heads, head_dim = 2, 4, 8          # hidden = 32
    max_seq_len, vocab_size = 16, 64
    B, S = 2, 8

    key = jax.random.PRNGKey(0)
    pkey, tkey = jax.random.split(key)
    params = init_params(pkey, layers, heads, head_dim, vocab_size)
    kblocks, khead = prep_kernel_params(params, heads, head_dim)
    cos_t, sin_t, freqs_cis = rotary_tables(head_dim, max_seq_len * 2)
    tokens = jax.random.randint(tkey, (B, S), 0, vocab_size, dtype=jnp.int32)

    out = transformer_forward(tokens, params['emb'], kblocks, khead,
                              cos_t[:S], sin_t[:S], heads, head_dim)
    out = jax.block_until_ready(out)

    ref = jax.block_until_ready(
        reference_forward(tokens, params, freqs_cis, heads, head_dim))

    assert out.shape == (B, S, vocab_size), out.shape
    err = float(jnp.max(jnp.abs(out - ref)))
    # bf16 MXU inputs + approx reciprocals vs. an f32 reference: loose tolerance.
    # (pl.reciprocal(approx=True) is used in attention softmax / SiLU / LM
    #  softmax; swap approx=False for exact-validation runs.)
    assert err < 5e-2, f"mismatch vs reference: {err}"
    print("KERNEL_OK")
</pallas_src>

<mosaic_0001>
module attributes {stable_mosaic.version = 11 : i64} {
  func.func @_transformer_block_kernel(%arg0: i32, %arg1: memref<1x8x32xf32, #tpu.memory_space<vmem>>, %arg2: memref<8x4xf32, #tpu.memory_space<vmem>>, %arg3: memref<8x4xf32, #tpu.memory_space<vmem>>, %arg4: memref<32x96xbf16, #tpu.memory_space<vmem>>, %arg5: memref<1x96xf32, #tpu.memory_space<vmem>>, %arg6: memref<32x32xbf16, #tpu.memory_space<vmem>>, %arg7: memref<1x32xf32, #tpu.memory_space<vmem>>, %arg8: memref<32x256xbf16, #tpu.memory_space<vmem>>, %arg9: memref<1x256xf32, #tpu.memory_space<vmem>>, %arg10: memref<128x32xbf16, #tpu.memory_space<vmem>>, %arg11: memref<1x32xf32, #tpu.memory_space<vmem>>, %arg12: memref<1x32xf32, #tpu.memory_space<vmem>>, %arg13: memref<1x32xf32, #tpu.memory_space<vmem>>, %arg14: memref<1x32xf32, #tpu.memory_space<vmem>>, %arg15: memref<1x32xf32, #tpu.memory_space<vmem>>, %arg16: memref<1x8x32xf32, #tpu.memory_space<vmem>>) attributes {dimension_semantics = [#tpu.dimension_semantics<parallel>], iteration_bounds = array<i64: 2>, scalar_prefetch = 0 : i64, scratch_operands = 0 : i64, tpu.core_type = #tpu.core_type<tc>, window_params = [{transform_indices = @transform_0, window_bounds = array<i64: 1, 8, 32>}, {pipeline_mode = #tpu.pipeline_mode<synchronous>, transform_indices = @transform_1, window_bounds = array<i64: 8, 4>}, {pipeline_mode = #tpu.pipeline_mode<synchronous>, transform_indices = @transform_2, window_bounds = array<i64: 8, 4>}, {pipeline_mode = #tpu.pipeline_mode<synchronous>, transform_indices = @transform_3, window_bounds = array<i64: 32, 96>}, {pipeline_mode = #tpu.pipeline_mode<synchronous>, transform_indices = @transform_4, window_bounds = array<i64: 1, 96>}, {pipeline_mode = #tpu.pipeline_mode<synchronous>, transform_indices = @transform_5, window_bounds = array<i64: 32, 32>}, {pipeline_mode = #tpu.pipeline_mode<synchronous>, transform_indices = @transform_6, window_bounds = array<i64: 1, 32>}, {pipeline_mode = #tpu.pipeline_mode<synchronous>, transform_indices = @transform_7, window_bounds = array<i64: 32, 256>}, {pipeline_mode = #tpu.pipeline_mode<synchronous>, transform_indices = @transform_8, window_bounds = array<i64: 1, 256>}, {pipeline_mode = #tpu.pipeline_mode<synchronous>, transform_indices = @transform_9, window_bounds = array<i64: 128, 32>}, {pipeline_mode = #tpu.pipeline_mode<synchronous>, transform_indices = @transform_10, window_bounds = array<i64: 1, 32>}, {pipeline_mode = #tpu.pipeline_mode<synchronous>, transform_indices = @transform_11, window_bounds = array<i64: 1, 32>}, {pipeline_mode = #tpu.pipeline_mode<synchronous>, transform_indices = @transform_12, window_bounds = array<i64: 1, 32>}, {pipeline_mode = #tpu.pipeline_mode<synchronous>, transform_indices = @transform_13, window_bounds = array<i64: 1, 32>}, {pipeline_mode = #tpu.pipeline_mode<synchronous>, transform_indices = @transform_14, window_bounds = array<i64: 1, 32>}, {transform_indices = @transform_15, window_bounds = array<i64: 1, 8, 32>}]} {
    %c0 = arith.constant 0 : index
    %c0_0 = arith.constant 0 : index
    %c0_1 = arith.constant 0 : index
    %0 = vector.load %arg1[%c0, %c0_0, %c0_1] : memref<1x8x32xf32, #tpu.memory_space<vmem>>, vector<1x8x32xf32>
    %1 = vector.shape_cast %0 : vector<1x8x32xf32> to vector<8x32xf32>
    %2 = arith.truncf %1 : vector<8x32xf32> to vector<8x32xbf16>
    %c0_2 = arith.constant 0 : index
    %c0_3 = arith.constant 0 : index
    %3 = vector.load %arg4[%c0_2, %c0_3] : memref<32x96xbf16, #tpu.memory_space<vmem>>, vector<32x96xbf16>
    %cst = arith.constant dense<0.000000e+00> : vector<8x96xf32>
    %4 = tpu.matmul %2, %3, %cst {dimension_numbers = #tpu.dot_dimension_numbers<[1], [0], [0], [1], [0, 0, 1, 1], [], []>} : vector<8x32xbf16>, vector<32x96xbf16>, vector<8x96xf32> -> vector<8x96xf32>
    %c0_4 = arith.constant 0 : index
    %c0_5 = arith.constant 0 : index
    %5 = vector.load %arg5[%c0_4, %c0_5] : memref<1x96xf32, #tpu.memory_space<vmem>>, vector<1x96xf32>
    %6 = vector.broadcast %5 : vector<1x96xf32> to vector<8x96xf32>
    %7 = arith.addf %4, %6 : vector<8x96xf32>
    %8 = vector.extract_strided_slice %7 {offsets = [0, 0], sizes = [8, 8], strides = [1, 1]} : vector<8x96xf32> to vector<8x8xf32>
    %9 = vector.extract_strided_slice %7 {offsets = [0, 8], sizes = [8, 8], strides = [1, 1]} : vector<8x96xf32> to vector<8x8xf32>
    %10 = vector.extract_strided_slice %7 {offsets = [0, 16], sizes = [8, 8], strides = [1, 1]} : vector<8x96xf32> to vector<8x8xf32>
    %11 = vector.extract_strided_slice %7 {offsets = [0, 24], sizes = [8, 8], strides = [1, 1]} : vector<8x96xf32> to vector<8x8xf32>
    %12 = vector.shape_cast %8 : vector<8x8xf32> to vector<1x8x8xf32>
    %13 = vector.shape_cast %9 : vector<8x8xf32> to vector<1x8x8xf32>
    %14 = vector.shape_cast %10 : vector<8x8xf32> to vector<1x8x8xf32>
    %15 = vector.shape_cast %11 : vector<8x8xf32> to vector<1x8x8xf32>
    %16 = tpu.concatenate %12, %13, %14, %15 in 0 : vector<1x8x8xf32>, vector<1x8x8xf32>, vector<1x8x8xf32>, vector<1x8x8xf32> -> vector<4x8x8xf32>
    %17 = vector.extract_strided_slice %7 {offsets = [0, 32], sizes = [8, 8], strides = [1, 1]} : vector<8x96xf32> to vector<8x8xf32>
    %18 = vector.extract_strided_slice %7 {offsets = [0, 40], sizes = [8, 8], strides = [1, 1]} : vector<8x96xf32> to vector<8x8xf32>
    %19 = vector.extract_strided_slice %7 {offsets = [0, 48], sizes = [8, 8], strides = [1, 1]} : vector<8x96xf32> to vector<8x8xf32>
    %20 = vector.extract_strided_slice %7 {offsets = [0, 56], sizes = [8, 8], strides = [1, 1]} : vector<8x96xf32> to vector<8x8xf32>
    %21 = vector.shape_cast %17 : vector<8x8xf32> to vector<1x8x8xf32>
    %22 = vector.shape_cast %18 : vector<8x8xf32> to vector<1x8x8xf32>
    %23 = vector.shape_cast %19 : vector<8x8xf32> to vector<1x8x8xf32>
    %24 = vector.shape_cast %20 : vector<8x8xf32> to vector<1x8x8xf32>
    %25 = tpu.concatenate %21, %22, %23, %24 in 0 : vector<1x8x8xf32>, vector<1x8x8xf32>, vector<1x8x8xf32>, vector<1x8x8xf32> -> vector<4x8x8xf32>
    %26 = vector.extract_strided_slice %7 {offsets = [0, 64], sizes = [8, 8], strides = [1, 1]} : vector<8x96xf32> to vector<8x8xf32>
    %27 = vector.extract_strided_slice %7 {offsets = [0, 72], sizes = [8, 8], strides = [1, 1]} : vector<8x96xf32> to vector<8x8xf32>
    %28 = vector.extract_strided_slice %7 {offsets = [0, 80], sizes = [8, 8], strides = [1, 1]} : vector<8x96xf32> to vector<8x8xf32>
    %29 = vector.extract_strided_slice %7 {offsets = [0, 88], sizes = [8, 8], strides = [1, 1]} : vector<8x96xf32> to vector<8x8xf32>
    %30 = vector.shape_cast %26 : vector<8x8xf32> to vector<1x8x8xf32>
    %31 = vector.shape_cast %27 : vector<8x8xf32> to vector<1x8x8xf32>
    %32 = vector.shape_cast %28 : vector<8x8xf32> to vector<1x8x8xf32>
    %33 = vector.shape_cast %29 : vector<8x8xf32> to vector<1x8x8xf32>
    %34 = tpu.concatenate %30, %31, %32, %33 in 0 : vector<1x8x8xf32>, vector<1x8x8xf32>, vector<1x8x8xf32>, vector<1x8x8xf32> -> vector<4x8x8xf32>
    %c0_6 = arith.constant 0 : index
    %c0_7 = arith.constant 0 : index
    %35 = vector.load %arg2[%c0_6, %c0_7] : memref<8x4xf32, #tpu.memory_space<vmem>>, vector<8x4xf32>
    %36 = vector.shape_cast %35 : vector<8x4xf32> to vector<1x8x4xf32>
    %37 = vector.shape_cast %36 : vector<1x8x4xf32> to vector<1x8x4xf32>
    %38 = vector.broadcast %37 : vector<1x8x4xf32> to vector<4x8x4xf32>
    %c0_8 = arith.constant 0 : index
    %c0_9 = arith.constant 0 : index
    %39 = vector.load %arg3[%c0_8, %c0_9] : memref<8x4xf32, #tpu.memory_space<vmem>>, vector<8x4xf32>
    %40 = vector.shape_cast %39 : vector<8x4xf32> to vector<1x8x4xf32>
    %41 = vector.shape_cast %40 : vector<1x8x4xf32> to vector<1x8x4xf32>
    %42 = vector.broadcast %41 : vector<1x8x4xf32> to vector<4x8x4xf32>
    %43 = vector.extract_strided_slice %16 {offsets = [0, 0, 0], sizes = [4, 8, 4], strides = [1, 1, 1]} : vector<4x8x8xf32> to vector<4x8x4xf32>
    %44 = vector.extract_strided_slice %16 {offsets = [0, 0, 4], sizes = [4, 8, 4], strides = [1, 1, 1]} : vector<4x8x8xf32> to vector<4x8x4xf32>
    %45 = arith.mulf %43, %38 : vector<4x8x4xf32>
    %46 = arith.mulf %44, %42 : vector<4x8x4xf32>
    %47 = arith.subf %45, %46 : vector<4x8x4xf32>
    %48 = arith.mulf %43, %42 : vector<4x8x4xf32>
    %49 = arith.mulf %44, %38 : vector<4x8x4xf32>
    %50 = arith.addf %48, %49 : vector<4x8x4xf32>
    %51 = tpu.concatenate %47, %50 in 2 : vector<4x8x4xf32>, vector<4x8x4xf32> -> vector<4x8x8xf32>
    %52 = arith.truncf %51 : vector<4x8x8xf32> to vector<4x8x8xbf16>
    %53 = vector.extract_strided_slice %25 {offsets = [0, 0, 0], sizes = [4, 8, 4], strides = [1, 1, 1]} : vector<4x8x8xf32> to vector<4x8x4xf32>
    %54 = vector.extract_strided_slice %25 {offsets = [0, 0, 4], sizes = [4, 8, 4], strides = [1, 1, 1]} : vector<4x8x8xf32> to vector<4x8x4xf32>
    %55 = arith.mulf %53, %38 : vector<4x8x4xf32>
    %56 = arith.mulf %54, %42 : vector<4x8x4xf32>
    %57 = arith.subf %55, %56 : vector<4x8x4xf32>
    %58 = arith.mulf %53, %42 : vector<4x8x4xf32>
    %59 = arith.mulf %54, %38 : vector<4x8x4xf32>
    %60 = arith.addf %58, %59 : vector<4x8x4xf32>
    %61 = tpu.concatenate %57, %60 in 2 : vector<4x8x4xf32>, vector<4x8x4xf32> -> vector<4x8x8xf32>
    %62 = arith.truncf %61 : vector<4x8x8xf32> to vector<4x8x8xbf16>
    %cst_10 = arith.constant dense<0.000000e+00> : vector<4x8x8xf32>
    %63 = tpu.matmul %52, %62, %cst_10 {dimension_numbers = #tpu.dot_dimension_numbers<[2], [2], [1], [1], [0, 0, 0, 1, 1, 1], [0], [0]>} : vector<4x8x8xbf16>, vector<4x8x8xbf16>, vector<4x8x8xf32> -> vector<4x8x8xf32>
    %cst_11 = arith.constant 0.353553385 : f32
    %64 = vector.broadcast %cst_11 : f32 to vector<4x8x8xf32>
    %65 = arith.mulf %63, %64 : vector<4x8x8xf32>
    %cst_12 = arith.constant dense<0xFF800000> : vector<4x8xf32>
    %66 = vector.multi_reduction <maximumf>, %65, %cst_12 [2] : vector<4x8x8xf32> to vector<4x8xf32>
    %67 = vector.shape_cast %66 : vector<4x8xf32> to vector<4x8x1xf32>
    %68 = vector.broadcast %67 : vector<4x8x1xf32> to vector<4x8x8xf32>
    %69 = arith.subf %65, %68 : vector<4x8x8xf32>
    %70 = math.exp %69 : vector<4x8x8xf32>
    %cst_13 = arith.constant dense<0.000000e+00> : vector<4x8xf32>
    %71 = vector.multi_reduction <add>, %70, %cst_13 [2] : vector<4x8x8xf32> to vector<4x8xf32>
    %72 = vector.shape_cast %71 : vector<4x8xf32> to vector<4x8x1xf32>
    %73 = tpu.reciprocal %72 {approx = true} : vector<4x8x1xf32> -> vector<4x8x1xf32>
    %74 = vector.broadcast %73 : vector<4x8x1xf32> to vector<4x8x8xf32>
    %75 = arith.mulf %70, %74 : vector<4x8x8xf32>
    %76 = arith.truncf %75 : vector<4x8x8xf32> to vector<4x8x8xbf16>
    %77 = arith.truncf %34 : vector<4x8x8xf32> to vector<4x8x8xbf16>
    %cst_14 = arith.constant dense<0.000000e+00> : vector<4x8x8xf32>
    %78 = tpu.matmul %76, %77, %cst_14 {dimension_numbers = #tpu.dot_dimension_numbers<[2], [1], [1], [2], [0, 0, 0, 1, 1, 2], [0], [0]>} : vector<4x8x8xbf16>, vector<4x8x8xbf16>, vector<4x8x8xf32> -> vector<4x8x8xf32>
    %79 = vector.extract_strided_slice %78 {offsets = [0, 0, 0], sizes = [1, 8, 8], strides = [1, 1, 1]} : vector<4x8x8xf32> to vector<1x8x8xf32>
    %80 = vector.shape_cast %79 : vector<1x8x8xf32> to vector<8x8xf32>
    %81 = vector.extract_strided_slice %78 {offsets = [1, 0, 0], sizes = [1, 8, 8], strides = [1, 1, 1]} : vector<4x8x8xf32> to vector<1x8x8xf32>
    %82 = vector.shape_cast %81 : vector<1x8x8xf32> to vector<8x8xf32>
    %83 = vector.extract_strided_slice %78 {offsets = [2, 0, 0], sizes = [1, 8, 8], strides = [1, 1, 1]} : vector<4x8x8xf32> to vector<1x8x8xf32>
    %84 = vector.shape_cast %83 : vector<1x8x8xf32> to vector<8x8xf32>
    %85 = vector.extract_strided_slice %78 {offsets = [3, 0, 0], sizes = [1, 8, 8], strides = [1, 1, 1]} : vector<4x8x8xf32> to vector<1x8x8xf32>
    %86 = vector.shape_cast %85 : vector<1x8x8xf32> to vector<8x8xf32>
    %87 = tpu.concatenate %80, %82, %84, %86 in 1 : vector<8x8xf32>, vector<8x8xf32>, vector<8x8xf32>, vector<8x8xf32> -> vector<8x32xf32>
    %88 = arith.truncf %87 : vector<8x32xf32> to vector<8x32xbf16>
    %c0_15 = arith.constant 0 : index
    %c0_16 = arith.constant 0 : index
    %89 = vector.load %arg6[%c0_15, %c0_16] : memref<32x32xbf16, #tpu.memory_space<vmem>>, vector<32x32xbf16>
    %cst_17 = arith.constant dense<0.000000e+00> : vector<8x32xf32>
    %90 = tpu.matmul %88, %89, %cst_17 {dimension_numbers = #tpu.dot_dimension_numbers<[1], [0], [0], [1], [0, 0, 1, 1], [], []>} : vector<8x32xbf16>, vector<32x32xbf16>, vector<8x32xf32> -> vector<8x32xf32>
    %c0_18 = arith.constant 0 : index
    %c0_19 = arith.constant 0 : index
    %91 = vector.load %arg7[%c0_18, %c0_19] : memref<1x32xf32, #tpu.memory_space<vmem>>, vector<1x32xf32>
    %92 = vector.broadcast %91 : vector<1x32xf32> to vector<8x32xf32>
    %93 = arith.addf %90, %92 : vector<8x32xf32>
    %c0_20 = arith.constant 0 : index
    %c0_21 = arith.constant 0 : index
    %94 = vector.load %arg12[%c0_20, %c0_21] : memref<1x32xf32, #tpu.memory_space<vmem>>, vector<1x32xf32>
    %c0_22 = arith.constant 0 : index
    %c0_23 = arith.constant 0 : index
    %95 = vector.load %arg13[%c0_22, %c0_23] : memref<1x32xf32, #tpu.memory_space<vmem>>, vector<1x32xf32>
    %cst_24 = arith.constant dense<0.000000e+00> : vector<8xf32>
    %96 = vector.multi_reduction <add>, %93, %cst_24 [1] : vector<8x32xf32> to vector<8xf32>
    %97 = vector.shape_cast %96 : vector<8xf32> to vector<8x1xf32>
    %cst_25 = arith.constant 3.200000e+01 : f32
    %98 = vector.broadcast %cst_25 : f32 to vector<8x1xf32>
    %99 = arith.divf %97, %98 : vector<8x1xf32>
    %100 = vector.broadcast %99 : vector<8x1xf32> to vector<8x32xf32>
    %101 = arith.subf %93, %100 : vector<8x32xf32>
    %102 = arith.mulf %101, %101 : vector<8x32xf32>
    %cst_26 = arith.constant dense<0.000000e+00> : vector<8xf32>
    %103 = vector.multi_reduction <add>, %102, %cst_26 [1] : vector<8x32xf32> to vector<8xf32>
    %104 = vector.shape_cast %103 : vector<8xf32> to vector<8x1xf32>
    %cst_27 = arith.constant 3.200000e+01 : f32
    %105 = vector.broadcast %cst_27 : f32 to vector<8x1xf32>
    %106 = arith.divf %104, %105 : vector<8x1xf32>
    %cst_28 = arith.constant 9.99999974E-6 : f32
    %107 = vector.broadcast %cst_28 : f32 to vector<8x1xf32>
    %108 = arith.addf %106, %107 : vector<8x1xf32>
    %109 = math.rsqrt %108 : vector<8x1xf32>
    %110 = vector.broadcast %109 : vector<8x1xf32> to vector<8x32xf32>
    %111 = arith.mulf %101, %110 : vector<8x32xf32>
    %112 = vector.broadcast %94 : vector<1x32xf32> to vector<8x32xf32>
    %113 = arith.mulf %111, %112 : vector<8x32xf32>
    %114 = vector.broadcast %95 : vector<1x32xf32> to vector<8x32xf32>
    %115 = arith.addf %113, %114 : vector<8x32xf32>
    %116 = arith.addf %115, %1 : vector<8x32xf32>
    %117 = arith.truncf %116 : vector<8x32xf32> to vector<8x32xbf16>
    %c0_29 = arith.constant 0 : index
    %c0_30 = arith.constant 0 : index
    %118 = vector.load %arg8[%c0_29, %c0_30] : memref<32x256xbf16, #tpu.memory_space<vmem>>, vector<32x256xbf16>
    %cst_31 = arith.constant dense<0.000000e+00> : vector<8x256xf32>
    %119 = tpu.matmul %117, %118, %cst_31 {dimension_numbers = #tpu.dot_dimension_numbers<[1], [0], [0], [1], [0, 0, 1, 1], [], []>} : vector<8x32xbf16>, vector<32x256xbf16>, vector<8x256xf32> -> vector<8x256xf32>
    %c0_32 = arith.constant 0 : index
    %c0_33 = arith.constant 0 : index
    %120 = vector.load %arg9[%c0_32, %c0_33] : memref<1x256xf32, #tpu.memory_space<vmem>>, vector<1x256xf32>
    %121 = vector.broadcast %120 : vector<1x256xf32> to vector<8x256xf32>
    %122 = arith.addf %119, %121 : vector<8x256xf32>
    %123 = vector.extract_strided_slice %122 {offsets = [0, 0], sizes = [8, 128], strides = [1, 1]} : vector<8x256xf32> to vector<8x128xf32>
    %124 = vector.extract_strided_slice %122 {offsets = [0, 128], sizes = [8, 128], strides = [1, 1]} : vector<8x256xf32> to vector<8x128xf32>
    %cst_34 = arith.constant 0.000000e+00 : f32
    %125 = vector.broadcast %cst_34 : f32 to vector<8x128xf32>
    %126 = arith.subf %125, %123 : vector<8x128xf32>
    %127 = math.exp %126 : vector<8x128xf32>
    %cst_35 = arith.constant 1.000000e+00 : f32
    %128 = vector.broadcast %cst_35 : f32 to vector<8x128xf32>
    %129 = arith.addf %128, %127 : vector<8x128xf32>
    %130 = tpu.reciprocal %129 {approx = true} : vector<8x128xf32> -> vector<8x128xf32>
    %131 = arith.mulf %123, %130 : vector<8x128xf32>
    %132 = arith.mulf %131, %124 : vector<8x128xf32>
    %133 = arith.truncf %132 : vector<8x128xf32> to vector<8x128xbf16>
    %c0_36 = arith.constant 0 : index
    %c0_37 = arith.constant 0 : index
    %134 = vector.load %arg10[%c0_36, %c0_37] : memref<128x32xbf16, #tpu.memory_space<vmem>>, vector<128x32xbf16>
    %cst_38 = arith.constant dense<0.000000e+00> : vector<8x32xf32>
    %135 = tpu.matmul %133, %134, %cst_38 {dimension_numbers = #tpu.dot_dimension_numbers<[1], [0], [0], [1], [0, 0, 1, 1], [], []>} : vector<8x128xbf16>, vector<128x32xbf16>, vector<8x32xf32> -> vector<8x32xf32>
    %c0_39 = arith.constant 0 : index
    %c0_40 = arith.constant 0 : index
    %136 = vector.load %arg11[%c0_39, %c0_40] : memref<1x32xf32, #tpu.memory_space<vmem>>, vector<1x32xf32>
    %137 = vector.broadcast %136 : vector<1x32xf32> to vector<8x32xf32>
    %138 = arith.addf %135, %137 : vector<8x32xf32>
    %c0_41 = arith.constant 0 : index
    %c0_42 = arith.constant 0 : index
    %139 = vector.load %arg14[%c0_41, %c0_42] : memref<1x32xf32, #tpu.memory_space<vmem>>, vector<1x32xf32>
    %c0_43 = arith.constant 0 : index
    %c0_44 = arith.constant 0 : index
    %140 = vector.load %arg15[%c0_43, %c0_44] : memref<1x32xf32, #tpu.memory_space<vmem>>, vector<1x32xf32>
    %cst_45 = arith.constant dense<0.000000e+00> : vector<8xf32>
    %141 = vector.multi_reduction <add>, %138, %cst_45 [1] : vector<8x32xf32> to vector<8xf32>
    %142 = vector.shape_cast %141 : vector<8xf32> to vector<8x1xf32>
    %cst_46 = arith.constant 3.200000e+01 : f32
    %143 = vector.broadcast %cst_46 : f32 to vector<8x1xf32>
    %144 = arith.divf %142, %143 : vector<8x1xf32>
    %145 = vector.broadcast %144 : vector<8x1xf32> to vector<8x32xf32>
    %146 = arith.subf %138, %145 : vector<8x32xf32>
    %147 = arith.mulf %146, %146 : vector<8x32xf32>
    %cst_47 = arith.constant dense<0.000000e+00> : vector<8xf32>
    %148 = vector.multi_reduction <add>, %147, %cst_47 [1] : vector<8x32xf32> to vector<8xf32>
    %149 = vector.shape_cast %148 : vector<8xf32> to vector<8x1xf32>
    %cst_48 = arith.constant 3.200000e+01 : f32
    %150 = vector.broadcast %cst_48 : f32 to vector<8x1xf32>
    %151 = arith.divf %149, %150 : vector<8x1xf32>
    %cst_49 = arith.constant 9.99999974E-6 : f32
    %152 = vector.broadcast %cst_49 : f32 to vector<8x1xf32>
    %153 = arith.addf %151, %152 : vector<8x1xf32>
    %154 = math.rsqrt %153 : vector<8x1xf32>
    %155 = vector.broadcast %154 : vector<8x1xf32> to vector<8x32xf32>
    %156 = arith.mulf %146, %155 : vector<8x32xf32>
    %157 = vector.broadcast %139 : vector<1x32xf32> to vector<8x32xf32>
    %158 = arith.mulf %156, %157 : vector<8x32xf32>
    %159 = vector.broadcast %140 : vector<1x32xf32> to vector<8x32xf32>
    %160 = arith.addf %158, %159 : vector<8x32xf32>
    %161 = arith.addf %160, %116 : vector<8x32xf32>
    %c0_50 = arith.constant 0 : index
    %c0_51 = arith.constant 0 : index
    %c0_52 = arith.constant 0 : index
    %162 = vector.load %arg16[%c0_50, %c0_51, %c0_52] : memref<1x8x32xf32, #tpu.memory_space<vmem>>, vector<1x8x32xf32>
    %163 = vector.shape_cast %162 : vector<1x8x32xf32> to vector<8x32xf32>
    %164 = vector.shape_cast %161 : vector<8x32xf32> to vector<1x8x32xf32>
    tpu.vector_store %arg16[%c0_50, %c0_51, %c0_52], %164 {strides = array<i32>} : memref<1x8x32xf32, #tpu.memory_space<vmem>>, vector<1x8x32xf32>,
    return
  }
  func.func @transform_0(%arg0: i32) -> (i32, i32, i32) {
    %c0_i32 = arith.constant 0 : i32
    %c0_i32_0 = arith.constant 0 : i32
    %c0_i32_1 = arith.constant 0 : i32
    return %arg0, %c0_i32, %c0_i32_0 : i32, i32, i32
  }
  func.func @transform_1(%arg0: i32) -> (i32, i32) {
    %c0_i32 = arith.constant 0 : i32
    %c0_i32_0 = arith.constant 0 : i32
    %c0_i32_1 = arith.constant 0 : i32
    return %c0_i32, %c0_i32_0 : i32, i32
  }
  func.func @transform_2(%arg0: i32) -> (i32, i32) {
    %c0_i32 = arith.constant 0 : i32
    %c0_i32_0 = arith.constant 0 : i32
    %c0_i32_1 = arith.constant 0 : i32
    return %c0_i32, %c0_i32_0 : i32, i32
  }
  func.func @transform_3(%arg0: i32) -> (i32, i32) {
    %c0_i32 = arith.constant 0 : i32
    %c0_i32_0 = arith.constant 0 : i32
    %c0_i32_1 = arith.constant 0 : i32
    return %c0_i32, %c0_i32_0 : i32, i32
  }
  func.func @transform_4(%arg0: i32) -> (i32, i32) {
    %c0_i32 = arith.constant 0 : i32
    %c0_i32_0 = arith.constant 0 : i32
    %c0_i32_1 = arith.constant 0 : i32
    return %c0_i32, %c0_i32_0 : i32, i32
  }
  func.func @transform_5(%arg0: i32) -> (i32, i32) {
    %c0_i32 = arith.constant 0 : i32
    %c0_i32_0 = arith.constant 0 : i32
    %c0_i32_1 = arith.constant 0 : i32
    return %c0_i32, %c0_i32_0 : i32, i32
  }
  func.func @transform_6(%arg0: i32) -> (i32, i32) {
    %c0_i32 = arith.constant 0 : i32
    %c0_i32_0 = arith.constant 0 : i32
    %c0_i32_1 = arith.constant 0 : i32
    return %c0_i32, %c0_i32_0 : i32, i32
  }
  func.func @transform_7(%arg0: i32) -> (i32, i32) {
    %c0_i32 = arith.constant 0 : i32
    %c0_i32_0 = arith.constant 0 : i32
    %c0_i32_1 = arith.constant 0 : i32
    return %c0_i32, %c0_i32_0 : i32, i32
  }
  func.func @transform_8(%arg0: i32) -> (i32, i32) {
    %c0_i32 = arith.constant 0 : i32
    %c0_i32_0 = arith.constant 0 : i32
    %c0_i32_1 = arith.constant 0 : i32
    return %c0_i32, %c0_i32_0 : i32, i32
  }
  func.func @transform_9(%arg0: i32) -> (i32, i32) {
    %c0_i32 = arith.constant 0 : i32
    %c0_i32_0 = arith.constant 0 : i32
    %c0_i32_1 = arith.constant 0 : i32
    return %c0_i32, %c0_i32_0 : i32, i32
  }
  func.func @transform_10(%arg0: i32) -> (i32, i32) {
    %c0_i32 = arith.constant 0 : i32
    %c0_i32_0 = arith.constant 0 : i32
    %c0_i32_1 = arith.constant 0 : i32
    return %c0_i32, %c0_i32_0 : i32, i32
  }
  func.func @transform_11(%arg0: i32) -> (i32, i32) {
    %c0_i32 = arith.constant 0 : i32
    %c0_i32_0 = arith.constant 0 : i32
    %c0_i32_1 = arith.constant 0 : i32
    return %c0_i32, %c0_i32_0 : i32, i32
  }
  func.func @transform_12(%arg0: i32) -> (i32, i32) {
    %c0_i32 = arith.constant 0 : i32
    %c0_i32_0 = arith.constant 0 : i32
    %c0_i32_1 = arith.constant 0 : i32
    return %c0_i32, %c0_i32_0 : i32, i32
  }
  func.func @transform_13(%arg0: i32) -> (i32, i32) {
    %c0_i32 = arith.constant 0 : i32
    %c0_i32_0 = arith.constant 0 : i32
    %c0_i32_1 = arith.constant 0 : i32
    return %c0_i32, %c0_i32_0 : i32, i32
  }
  func.func @transform_14(%arg0: i32) -> (i32, i32) {
    %c0_i32 = arith.constant 0 : i32
    %c0_i32_0 = arith.constant 0 : i32
    %c0_i32_1 = arith.constant 0 : i32
    return %c0_i32, %c0_i32_0 : i32, i32
  }
  func.func @transform_15(%arg0: i32) -> (i32, i32, i32) {
    %c0_i32 = arith.constant 0 : i32
    %c0_i32_0 = arith.constant 0 : i32
    %c0_i32_1 = arith.constant 0 : i32
    return %arg0, %c0_i32, %c0_i32_0 : i32, i32, i32
  }
}

</mosaic_0001>

<llo_original>
// kernel: tpu_custom_call.1
$region0: #{tpu_custom_call.1}
  #allocation0 [shape = 'u32[]', space=smem, size = 0x4, offset = 0x4, fixed_abs, tag = 'smem constant byte address 0x4 - core index']
  #allocation1 [shape = 'u32[144,128]{1,0:T(1,128)}', space=vmem, size = 0x12000, scoped, tag = 'internal scratch']
  %s0 = inlined_call_operand.hbm [shape: f32[2,8,32], index: 0, kind: input, shape index: {}]
  %s1 = inlined_call_operand.hbm [shape: f32[8,4], index: 1, kind: input, shape index: {}]
  %s2 = inlined_call_operand.hbm [shape: f32[8,4], index: 2, kind: input, shape index: {}]
  %s3 = inlined_call_operand.hbm [shape: bf16[32,96], index: 3, kind: input, shape index: {}]
  %s4 = inlined_call_operand.hbm [shape: f32[1,96], index: 4, kind: input, shape index: {}]
  %s5 = inlined_call_operand.hbm [shape: bf16[32,32], index: 5, kind: input, shape index: {}]
  %s6 = inlined_call_operand.hbm [shape: f32[1,32], index: 6, kind: input, shape index: {}]
  %s7 = inlined_call_operand.hbm [shape: bf16[32,256], index: 7, kind: input, shape index: {}]
  %s8 = inlined_call_operand.hbm [shape: f32[1,256], index: 8, kind: input, shape index: {}]
  %s9 = inlined_call_operand.hbm [shape: bf16[128,32], index: 9, kind: input, shape index: {}]
  %s10 = inlined_call_operand.hbm [shape: f32[1,32], index: 10, kind: input, shape index: {}]
  %s11 = inlined_call_operand.hbm [shape: f32[1,32], index: 11, kind: input, shape index: {}]
  %s12 = inlined_call_operand.hbm [shape: f32[1,32], index: 12, kind: input, shape index: {}]
  %s13 = inlined_call_operand.hbm [shape: f32[1,32], index: 13, kind: input, shape index: {}]
  %s14 = inlined_call_operand.hbm [shape: f32[1,32], index: 14, kind: input, shape index: {}]
  %s15 = inlined_call_operand.hbm [shape: f32[2,8,32], index: 15, kind: output, shape index: {}]
  %s16 = sld [smem:[#allocation0]]
  $region153: #{tpu_custom_call.1} parent=0
    _
  %s18 = ssub.s32 1, %s16
  %s19 = scalar_select 0, %s18, %s16
  $region1: #{tpu_custom_call.1} parent=0
    #allocation2 [shape = 'u8[8192]{0}', space=vmem, size = 0x2000, scoped, tag = 'input window, operand 0']
    #allocation3 [shape = 's32[2]{0}', space=sflag, size = 0x8, scoped, tag = 'scoped memory for tpu_custom_call.1']
    #allocation4 [shape = 's32[2]{0}', space=sflag, size = 0x8, scoped, tag = 'scoped memory for tpu_custom_call.1']
    #allocation5 [shape = 'u8[4096]{0}', space=vmem, size = 0x1000, scoped, tag = 'input window, operand 1, single buffered']
    #allocation6 [shape = 's32[1]{0}', space=sflag, size = 0x4, scoped, tag = 'scoped memory for tpu_custom_call.1']
    #allocation7 [shape = 'u8[4096]{0}', space=vmem, size = 0x1000, scoped, tag = 'input window, operand 2, single buffered']
    #allocation8 [shape = 'u8[8192]{0}', space=vmem, size = 0x2000, scoped, tag = 'input window, operand 3, single buffered']
    #allocation9 [shape = 's32[1]{0}', space=sflag, size = 0x4, scoped, tag = 'scoped memory for tpu_custom_call.1']
    #allocation10 [shape = 'u8[512]{0}', space=vmem, size = 0x400, scoped, tag = 'input window, operand 4, single buffered']
    #allocation11 [shape = 'u8[8192]{0}', space=vmem, size = 0x2000, scoped, tag = 'input window, operand 5, single buffered']
    #allocation12 [shape = 's32[1]{0}', space=sflag, size = 0x4, scoped, tag = 'scoped memory for tpu_custom_call.1']
    #allocation13 [shape = 'u8[512]{0}', space=vmem, size = 0x400, scoped, tag = 'input window, operand 6, single buffered']
    #allocation14 [shape = 'u8[16384]{0}', space=vmem, size = 0x4000, scoped, tag = 'input window, operand 7, single buffered']
    #allocation15 [shape = 's32[1]{0}', space=sflag, size = 0x4, scoped, tag = 'scoped memory for tpu_custom_call.1']
    #allocation16 [shape = 'u8[1024]{0}', space=vmem, size = 0x400, scoped, tag = 'input window, operand 8, single buffered']
    #allocation17 [shape = 'u8[32768]{0}', space=vmem, size = 0x8000, scoped, tag = 'input window, operand 9, single buffered']
    #allocation18 [shape = 's32[1]{0}', space=sflag, size = 0x4, scoped, tag = 'scoped memory for tpu_custom_call.1']
    #allocation19 [shape = 'u8[512]{0}', space=vmem, size = 0x400, scoped, tag = 'input window, operand 10, single buffered']
    #allocation20 [shape = 'u8[512]{0}', space=vmem, size = 0x400, scoped, tag = 'input window, operand 11, single buffered']
    #allocation21 [shape = 's32[1]{0}', space=sflag, size = 0x4, scoped, tag = 'scoped memory for tpu_custom_call.1']
    #allocation22 [shape = 'u8[512]{0}', space=vmem, size = 0x400, scoped, tag = 'input window, operand 12, single buffered']
    #allocation23 [shape = 'u8[512]{0}', space=vmem, size = 0x400, scoped, tag = 'input window, operand 13, single buffered']
    #allocation24 [shape = 's32[1]{0}', space=sflag, size = 0x4, scoped, tag = 'scoped memory for tpu_custom_call.1']
    #allocation25 [shape = 'u8[512]{0}', space=vmem, size = 0x400, scoped, tag = 'input window, operand 14, single buffered']
    #allocation26 [shape = 'u8[8192]{0}', space=vmem, size = 0x2000, scoped, tag = 'output window, operand 0']
    %20 = vsyncpa [#allocation3], 0
    %s21 = scalar_lea.sflag [#allocation3], 1
    %22 = vsyncpa %s21, 0
    %23 = vsyncpa [#allocation6], 0
    %24 = vsyncpa [#allocation9], 0
    %25 = vsyncpa [#allocation12], 0
    %26 = vsyncpa [#allocation15], 0
    %27 = vsyncpa [#allocation18], 0
    %28 = vsyncpa [#allocation21], 0
    %29 = vsyncpa [#allocation24], 0
    %30 = vsyncpa [#allocation4], 0
    %s31 = scalar_lea.sflag [#allocation4], 1
    %32 = vsyncpa %s31, 0
    loop: start=0, step=1, limit=4
    $region2: #{tpu_custom_call.1} parent=1 // loop_pre_header
      _
    $region3: #{tpu_custom_call.1} parent=1 // loop_header
      %s34 = sphi 0, %s38
      %p35 = scmp.ge.s32.totalorder %s34, 4
      %s44 = sphi 0, %s46
      %s47 = sphi 0, %s44
      %s48 = sphi 0, %s47
      %s64 = sphi 0, %s48
      %s68 = sphi 0, %s68
      %s70 = sphi 0, %s68
      %s71 = sphi 0, %s70
      %s85 = sphi 0, %s71
      %s89 = sphi 0, %s89
      %s91 = sphi 0, %s89
      %s92 = sphi 0, %s91
      %s106 = sphi 0, %s92
      %s110 = sphi 0, %s110
      %s112 = sphi 0, %s110
      %s113 = sphi 0, %s112
      %s127 = sphi 0, %s113
      %s131 = sphi 0, %s131
      %s133 = sphi 0, %s131
      %s134 = sphi 0, %s133
      %s148 = sphi 0, %s134
      %s152 = sphi 0, %s152
      %s154 = sphi 0, %s152
      %s155 = sphi 0, %s154
      %s169 = sphi 0, %s155
      %s173 = sphi 0, %s173
      %s175 = sphi 0, %s173
      %s176 = sphi 0, %s175
      %s190 = sphi 0, %s176
      %s194 = sphi 0, %s194
      %s196 = sphi 0, %s194
      %s197 = sphi 0, %s196
      %s211 = sphi 0, %s197
      %s215 = sphi 0, %s215
      %s217 = sphi 0, %s215
      %s218 = sphi 0, %s217
      %s232 = sphi 0, %s218
      %s236 = sphi 0, %s236
      %s238 = sphi 0, %s236
      %s239 = sphi 0, %s238
      %s253 = sphi 0, %s239
      %s257 = sphi 0, %s257
      %s259 = sphi 0, %s257
      %s260 = sphi 0, %s259
      %s274 = sphi 0, %s260
      %s278 = sphi 0, %s278
      %s280 = sphi 0, %s278
      %s281 = sphi 0, %s280
      %s295 = sphi 0, %s281
      %s299 = sphi 0, %s299
      %s301 = sphi 0, %s299
      %s302 = sphi 0, %s301
      %s316 = sphi 0, %s302
      %s320 = sphi 0, %s320
      %s322 = sphi 0, %s320
      %s323 = sphi 0, %s322
      %s337 = sphi 0, %s323
      %s341 = sphi 0, %s341
      %s343 = sphi 0, %s341
      %s344 = sphi 0, %s343
      %s358 = sphi 0, %s344
      %s364 = sphi 0, %s366
      %s367 = sphi 0, %s364
      %s368 = sphi 0, %s367
      %s384 = sphi 0, %s368
    $region4: #{tpu_custom_call.1} parent=1 // loop_header_branch
      %37 = sbr.rel (%p35) target = $region8
    $region5: #{tpu_custom_call.1} parent=1 // loop_body
      %s39 = ssub.s32 %s34, 1
      %s40 = ssub.s32 %s34, 2
      %s41 = sadd.s32 %s34, 1
      %s42 = ssub.s32 %s34, %s41
      %p43 = scmp.eq.s32.totalorder %s42, 0
      %s45 = sadd.s32 %s44, 1
      %s46 = scalar_select %p43, %s44, %s45
      %p49 = pneg %p43
      %p50 = scmp.eq.s32.totalorder %s34, 1
      %p51 = por %p49, %p50
      %p52 = scmp.ne.s32.totalorder %s44, %s47
      %p53 = scmp.eq.s32.totalorder %s34, 0
      %p54 = por %p52, %p53
      %p55 = scmp.ne.s32.totalorder %s44, %s47
      %p56 = scmp.eq.s32.totalorder %s39, 1
      %p57 = por %p55, %p56
      %p58 = scmp.ne.s32.totalorder %s47, %s48
      %p59 = scmp.eq.s32.totalorder %s39, 0
      %p60 = por %p58, %p59
      %p61 = scmp.ne.s32.totalorder %s47, %s48
      %p62 = scmp.eq.s32.totalorder %s40, 1
      %p63 = por %p61, %p62
      %p65 = scmp.ne.s32.totalorder %s48, %s64
      %p66 = scmp.eq.s32.totalorder %s40, 0
      %p67 = por %p65, %p66
      %s69 = sadd.s32 %s68, 1
      %p72 = scmp.eq.s32.totalorder %s34, 1
      %p73 = scmp.ne.s32.totalorder %s68, %s70
      %p74 = scmp.eq.s32.totalorder %s34, 0
      %p75 = por %p73, %p74
      %p76 = scmp.ne.s32.totalorder %s68, %s70
      %p77 = scmp.eq.s32.totalorder %s39, 1
      %p78 = por %p76, %p77
      %p79 = scmp.ne.s32.totalorder %s70, %s71
      %p80 = scmp.eq.s32.totalorder %s39, 0
      %p81 = por %p79, %p80
      %p82 = scmp.ne.s32.totalorder %s70, %s71
      %p83 = scmp.eq.s32.totalorder %s40, 1
      %p84 = por %p82, %p83
      %p86 = scmp.ne.s32.totalorder %s71, %s85
      %p87 = scmp.eq.s32.totalorder %s40, 0
      %p88 = por %p86, %p87
      %s90 = sadd.s32 %s89, 1
      %p93 = scmp.eq.s32.totalorder %s34, 1
      %p94 = scmp.ne.s32.totalorder %s89, %s91
      %p95 = scmp.eq.s32.totalorder %s34, 0
      %p96 = por %p94, %p95
      %p97 = scmp.ne.s32.totalorder %s89, %s91
      %p98 = scmp.eq.s32.totalorder %s39, 1
      %p99 = por %p97, %p98
      %p100 = scmp.ne.s32.totalorder %s91, %s92
      %p101 = scmp.eq.s32.totalorder %s39, 0
      %p102 = por %p100, %p101
      %p103 = scmp.ne.s32.totalorder %s91, %s92
      %p104 = scmp.eq.s32.totalorder %s40, 1
      %p105 = por %p103, %p104
      %p107 = scmp.ne.s32.totalorder %s92, %s106
      %p108 = scmp.eq.s32.totalorder %s40, 0
      %p109 = por %p107, %p108
      %s111 = sadd.s32 %s110, 1
      %p114 = scmp.eq.s32.totalorder %s34, 1
      %p115 = scmp.ne.s32.totalorder %s110, %s112
      %p116 = scmp.eq.s32.totalorder %s34, 0
      %p117 = por %p115, %p116
      %p118 = scmp.ne.s32.totalorder %s110, %s112
      %p119 = scmp.eq.s32.totalorder %s39, 1
      %p120 = por %p118, %p119
      %p121 = scmp.ne.s32.totalorder %s112, %s113
      %p122 = scmp.eq.s32.totalorder %s39, 0
      %p123 = por %p121, %p122
      %p124 = scmp.ne.s32.totalorder %s112, %s113
      %p125 = scmp.eq.s32.totalorder %s40, 1
      %p126 = por %p124, %p125
      %p128 = scmp.ne.s32.totalorder %s113, %s127
      %p129 = scmp.eq.s32.totalorder %s40, 0
      %p130 = por %p128, %p129
      %s132 = sadd.s32 %s131, 1
      %p135 = scmp.eq.s32.totalorder %s34, 1
      %p136 = scmp.ne.s32.totalorder %s131, %s133
      %p137 = scmp.eq.s32.totalorder %s34, 0
      %p138 = por %p136, %p137
      %p139 = scmp.ne.s32.totalorder %s131, %s133
      %p140 = scmp.eq.s32.totalorder %s39, 1
      %p141 = por %p139, %p140
      %p142 = scmp.ne.s32.totalorder %s133, %s134
      %p143 = scmp.eq.s32.totalorder %s39, 0
      %p144 = por %p142, %p143
      %p145 = scmp.ne.s32.totalorder %s133, %s134
      %p146 = scmp.eq.s32.totalorder %s40, 1
      %p147 = por %p145, %p146
      %p149 = scmp.ne.s32.totalorder %s134, %s148
      %p150 = scmp.eq.s32.totalorder %s40, 0
      %p151 = por %p149, %p150
      %s153 = sadd.s32 %s152, 1
      %p156 = scmp.eq.s32.totalorder %s34, 1
      %p157 = scmp.ne.s32.totalorder %s152, %s154
      %p158 = scmp.eq.s32.totalorder %s34, 0
      %p159 = por %p157, %p158
      %p160 = scmp.ne.s32.totalorder %s152, %s154
      %p161 = scmp.eq.s32.totalorder %s39, 1
      %p162 = por %p160, %p161
      %p163 = scmp.ne.s32.totalorder %s154, %s155
      %p164 = scmp.eq.s32.totalorder %s39, 0
      %p165 = por %p163, %p164
      %p166 = scmp.ne.s32.totalorder %s154, %s155
      %p167 = scmp.eq.s32.totalorder %s40, 1
      %p168 = por %p166, %p167
      %p170 = scmp.ne.s32.totalorder %s155, %s169
      %p171 = scmp.eq.s32.totalorder %s40, 0
      %p172 = por %p170, %p171
      %s174 = sadd.s32 %s173, 1
      %p177 = scmp.eq.s32.totalorder %s34, 1
      %p178 = scmp.ne.s32.totalorder %s173, %s175
      %p179 = scmp.eq.s32.totalorder %s34, 0
      %p180 = por %p178, %p179
      %p181 = scmp.ne.s32.totalorder %s173, %s175
      %p182 = scmp.eq.s32.totalorder %s39, 1
      %p183 = por %p181, %p182
      %p184 = scmp.ne.s32.totalorder %s175, %s176
      %p185 = scmp.eq.s32.totalorder %s39, 0
      %p186 = por %p184, %p185
      %p187 = scmp.ne.s32.totalorder %s175, %s176
      %p188 = scmp.eq.s32.totalorder %s40, 1
      %p189 = por %p187, %p188
      %p191 = scmp.ne.s32.totalorder %s176, %s190
      %p192 = scmp.eq.s32.totalorder %s40, 0
      %p193 = por %p191, %p192
      %s195 = sadd.s32 %s194, 1
      %p198 = scmp.eq.s32.totalorder %s34, 1
      %p199 = scmp.ne.s32.totalorder %s194, %s196
      %p200 = scmp.eq.s32.totalorder %s34, 0
      %p201 = por %p199, %p200
      %p202 = scmp.ne.s32.totalorder %s194, %s196
      %p203 = scmp.eq.s32.totalorder %s39, 1
      %p204 = por %p202, %p203
      %p205 = scmp.ne.s32.totalorder %s196, %s197
      %p206 = scmp.eq.s32.totalorder %s39, 0
      %p207 = por %p205, %p206
      %p208 = scmp.ne.s32.totalorder %s196, %s197
      %p209 = scmp.eq.s32.totalorder %s40, 1
      %p210 = por %p208, %p209
      %p212 = scmp.ne.s32.totalorder %s197, %s211
      %p213 = scmp.eq.s32.totalorder %s40, 0
      %p214 = por %p212, %p213
      %s216 = sadd.s32 %s215, 1
      %p219 = scmp.eq.s32.totalorder %s34, 1
      %p220 = scmp.ne.s32.totalorder %s215, %s217
      %p221 = scmp.eq.s32.totalorder %s34, 0
      %p222 = por %p220, %p221
      %p223 = scmp.ne.s32.totalorder %s215, %s217
      %p224 = scmp.eq.s32.totalorder %s39, 1
      %p225 = por %p223, %p224
      %p226 = scmp.ne.s32.totalorder %s217, %s218
      %p227 = scmp.eq.s32.totalorder %s39, 0
      %p228 = por %p226, %p227
      %p229 = scmp.ne.s32.totalorder %s217, %s218
      %p230 = scmp.eq.s32.totalorder %s40, 1
      %p231 = por %p229, %p230
      %p233 = scmp.ne.s32.totalorder %s218, %s232
      %p234 = scmp.eq.s32.totalorder %s40, 0
      %p235 = por %p233, %p234
      %s237 = sadd.s32 %s236, 1
      %p240 = scmp.eq.s32.totalorder %s34, 1
      %p241 = scmp.ne.s32.totalorder %s236, %s238
      %p242 = scmp.eq.s32.totalorder %s34, 0
      %p243 = por %p241, %p242
      %p244 = scmp.ne.s32.totalorder %s236, %s238
      %p245 = scmp.eq.s32.totalorder %s39, 1
      %p246 = por %p244, %p245
      %p247 = scmp.ne.s32.totalorder %s238, %s239
      %p248 = scmp.eq.s32.totalorder %s39, 0
      %p249 = por %p247, %p248
      %p250 = scmp.ne.s32.totalorder %s238, %s239
      %p251 = scmp.eq.s32.totalorder %s40, 1
      %p252 = por %p250, %p251
      %p254 = scmp.ne.s32.totalorder %s239, %s253
      %p255 = scmp.eq.s32.totalorder %s40, 0
      %p256 = por %p254, %p255
      %s258 = sadd.s32 %s257, 1
      %p261 = scmp.eq.s32.totalorder %s34, 1
      %p262 = scmp.ne.s32.totalorder %s257, %s259
      %p263 = scmp.eq.s32.totalorder %s34, 0
      %p264 = por %p262, %p263
      %p265 = scmp.ne.s32.totalorder %s257, %s259
      %p266 = scmp.eq.s32.totalorder %s39, 1
      %p267 = por %p265, %p266
      %p268 = scmp.ne.s32.totalorder %s259, %s260
      %p269 = scmp.eq.s32.totalorder %s39, 0
      %p270 = por %p268, %p269
      %p271 = scmp.ne.s32.totalorder %s259, %s260
      %p272 = scmp.eq.s32.totalorder %s40, 1
      %p273 = por %p271, %p272
      %p275 = scmp.ne.s32.totalorder %s260, %s274
      %p276 = scmp.eq.s32.totalorder %s40, 0
      %p277 = por %p275, %p276
      %s279 = sadd.s32 %s278, 1
      %p282 = scmp.eq.s32.totalorder %s34, 1
      %p283 = scmp.ne.s32.totalorder %s278, %s280
      %p284 = scmp.eq.s32.totalorder %s34, 0
      %p285 = por %p283, %p284
      %p286 = scmp.ne.s32.totalorder %s278, %s280
      %p287 = scmp.eq.s32.totalorder %s39, 1
      %p288 = por %p286, %p287
      %p289 = scmp.ne.s32.totalorder %s280, %s281
      %p290 = scmp.eq.s32.totalorder %s39, 0
      %p291 = por %p289, %p290
      %p292 = scmp.ne.s32.totalorder %s280, %s281
      %p293 = scmp.eq.s32.totalorder %s40, 1
      %p294 = por %p292, %p293
      %p296 = scmp.ne.s32.totalorder %s281, %s295
      %p297 = scmp.eq.s32.totalorder %s40, 0
      %p298 = por %p296, %p297
      %s300 = sadd.s32 %s299, 1
      %p303 = scmp.eq.s32.totalorder %s34, 1
      %p304 = scmp.ne.s32.totalorder %s299, %s301
      %p305 = scmp.eq.s32.totalorder %s34, 0
      %p306 = por %p304, %p305
      %p307 = scmp.ne.s32.totalorder %s299, %s301
      %p308 = scmp.eq.s32.totalorder %s39, 1
      %p309 = por %p307, %p308
      %p310 = scmp.ne.s32.totalorder %s301, %s302
      %p311 = scmp.eq.s32.totalorder %s39, 0
      %p312 = por %p310, %p311
      %p313 = scmp.ne.s32.totalorder %s301, %s302
      %p314 = scmp.eq.s32.totalorder %s40, 1
      %p315 = por %p313, %p314
      %p317 = scmp.ne.s32.totalorder %s302, %s316
      %p318 = scmp.eq.s32.totalorder %s40, 0
      %p319 = por %p317, %p318
      %s321 = sadd.s32 %s320, 1
      %p324 = scmp.eq.s32.totalorder %s34, 1
      %p325 = scmp.ne.s32.totalorder %s320, %s322
      %p326 = scmp.eq.s32.totalorder %s34, 0
      %p327 = por %p325, %p326
      %p328 = scmp.ne.s32.totalorder %s320, %s322
      %p329 = scmp.eq.s32.totalorder %s39, 1
      %p330 = por %p328, %p329
      %p331 = scmp.ne.s32.totalorder %s322, %s323
      %p332 = scmp.eq.s32.totalorder %s39, 0
      %p333 = por %p331, %p332
      %p334 = scmp.ne.s32.totalorder %s322, %s323
      %p335 = scmp.eq.s32.totalorder %s40, 1
      %p336 = por %p334, %p335
      %p338 = scmp.ne.s32.totalorder %s323, %s337
      %p339 = scmp.eq.s32.totalorder %s40, 0
      %p340 = por %p338, %p339
      %s342 = sadd.s32 %s341, 1
      %p345 = scmp.eq.s32.totalorder %s34, 1
      %p346 = scmp.ne.s32.totalorder %s341, %s343
      %p347 = scmp.eq.s32.totalorder %s34, 0
      %p348 = por %p346, %p347
      %p349 = scmp.ne.s32.totalorder %s341, %s343
      %p350 = scmp.eq.s32.totalorder %s39, 1
      %p351 = por %p349, %p350
      %p352 = scmp.ne.s32.totalorder %s343, %s344
      %p353 = scmp.eq.s32.totalorder %s39, 0
      %p354 = por %p352, %p353
      %p355 = scmp.ne.s32.totalorder %s343, %s344
      %p356 = scmp.eq.s32.totalorder %s40, 1
      %p357 = por %p355, %p356
      %p359 = scmp.ne.s32.totalorder %s344, %s358
      %p360 = scmp.eq.s32.totalorder %s40, 0
      %p361 = por %p359, %p360
      %s362 = ssub.s32 %s34, %s41
      %p363 = scmp.eq.s32.totalorder %s362, 0
      %s365 = sadd.s32 %s364, 1
      %s366 = scalar_select %p363, %s364, %s365
      %p369 = pneg %p363
      %p370 = scmp.eq.s32.totalorder %s34, 1
      %p371 = por %p369, %p370
      %p372 = scmp.ne.s32.totalorder %s364, %s367
      %p373 = scmp.eq.s32.totalorder %s34, 0
      %p374 = por %p372, %p373
      %p375 = scmp.ne.s32.totalorder %s364, %s367
      %p376 = scmp.eq.s32.totalorder %s39, 1
      %p377 = por %p375, %p376
      %p378 = scmp.ne.s32.totalorder %s367, %s368
      %p379 = scmp.eq.s32.totalorder %s39, 0
      %p380 = por %p378, %p379
      %p381 = scmp.ne.s32.totalorder %s367, %s368
      %p382 = scmp.eq.s32.totalorder %s40, 1
      %p383 = por %p381, %p382
      %p385 = scmp.ne.s32.totalorder %s368, %s384
      %p386 = scmp.eq.s32.totalorder %s40, 0
      %p387 = por %p385, %p386
      %p388 = scmp.le.s32.totalorder 1, %s34
      %p389 = scmp.lt.s32.totalorder %s34, 3
      %p390 = pnand %p388, %p389
      %p391 = pneg %p390
      // Predicated region
      $region9: #{tpu_custom_call.1} parent=5 // pred_check
        _
      $region10: #{tpu_custom_call.1} parent=5 // pred_check_branch
        %393 = sbr.rel (%p390) target = $region12
      $region11: #{tpu_custom_call.1} parent=5 // pred_region
        %s394 = ssub.s32 %s34, 1
        // Predicated region
        $region13: #{tpu_custom_call.1} parent=11 // pred_check
          %p395 = pneg %p81
        $region14: #{tpu_custom_call.1} parent=11 // pred_check_branch
          %397 = sbr.rel (%p395) target = $region16
        $region15: #{tpu_custom_call.1} parent=11 // pred_region
          %s399 = ssub.s32 128, 128
          %400 = vsyncadd [#allocation6], %s399
          %s402 = sshll.u32 [#allocation5], 4
          %s403 = int_to_ptr.vmem [resolvable:$true] %s402
          %405 = dma.hbm_to_vmem [thread:$0]  %s1, 128, %s403, [#allocation6]
        $region16: #{tpu_custom_call.1} parent=11 // pred_fallthru
          _
        // Predicated region
        $region17: #{tpu_custom_call.1} parent=11 // pred_check
          %p406 = pneg %p102
        $region18: #{tpu_custom_call.1} parent=11 // pred_check_branch
          %408 = sbr.rel (%p406) target = $region20
        $region19: #{tpu_custom_call.1} parent=11 // pred_region
          %s410 = ssub.s32 128, 128
          %411 = vsyncadd [#allocation6], %s410
          %s413 = sshll.u32 [#allocation7], 4
          %s414 = int_to_ptr.vmem [resolvable:$true] %s413
          %416 = dma.hbm_to_vmem [thread:$0]  %s2, 128, %s414, [#allocation6]
        $region20: #{tpu_custom_call.1} parent=11 // pred_fallthru
          _
        // Predicated region
        $region21: #{tpu_custom_call.1} parent=11 // pred_check
          %p417 = pneg %p123
        $region22: #{tpu_custom_call.1} parent=11 // pred_check_branch
          %419 = sbr.rel (%p417) target = $region24
        $region23: #{tpu_custom_call.1} parent=11 // pred_region
          %s421 = ssub.s32 256, 256
          %422 = vsyncadd [#allocation9], %s421
          %s423 = sshll.u32 [#allocation8], 4
          %s424 = int_to_ptr.vmem [resolvable:$true] %s423
          %429 = dma.hbm_to_vmem [thread:$0]  %s3, 256, %s424, [#allocation9], 64, 64, 4
        $region24: #{tpu_custom_call.1} parent=11 // pred_fallthru
          _
        // Predicated region
        $region25: #{tpu_custom_call.1} parent=11 // pred_check
          %p430 = pneg %p144
        $region26: #{tpu_custom_call.1} parent=11 // pred_check_branch
          %432 = sbr.rel (%p430) target = $region28
        $region27: #{tpu_custom_call.1} parent=11 // pred_region
          %s434 = ssub.s32 16, 16
          %435 = vsyncadd [#allocation9], %s434
          %s437 = sshll.u32 [#allocation10], 4
          %s438 = int_to_ptr.vmem [resolvable:$true] %s437
          %440 = dma.hbm_to_vmem [thread:$0]  %s4, 16, %s438, [#allocation9]
        $region28: #{tpu_custom_call.1} parent=11 // pred_fallthru
          _
        // Predicated region
        $region29: #{tpu_custom_call.1} parent=11 // pred_check
          %p441 = pneg %p165
        $region30: #{tpu_custom_call.1} parent=11 // pred_check_branch
          %443 = sbr.rel (%p441) target = $region32
        $region31: #{tpu_custom_call.1} parent=11 // pred_region
          %s445 = ssub.s32 256, 256
          %446 = vsyncadd [#allocation12], %s445
          %s447 = sshll.u32 [#allocation11], 4
          %s448 = int_to_ptr.vmem [resolvable:$true] %s447
          %453 = dma.hbm_to_vmem [thread:$0]  %s5, 256, %s448, [#allocation12], 64, 64, 4
        $region32: #{tpu_custom_call.1} parent=11 // pred_fallthru
          _
        // Predicated region
        $region33: #{tpu_custom_call.1} parent=11 // pred_check
          %p454 = pneg %p186
        $region34: #{tpu_custom_call.1} parent=11 // pred_check_branch
          %456 = sbr.rel (%p454) target = $region36
        $region35: #{tpu_custom_call.1} parent=11 // pred_region
          %s458 = ssub.s32 16, 16
          %459 = vsyncadd [#allocation12], %s458
          %s461 = sshll.u32 [#allocation13], 4
          %s462 = int_to_ptr.vmem [resolvable:$true] %s461
          %464 = dma.hbm_to_vmem [thread:$0]  %s6, 16, %s462, [#allocation12]
        $region36: #{tpu_custom_call.1} parent=11 // pred_fallthru
          _
        // Predicated region
        $region37: #{tpu_custom_call.1} parent=11 // pred_check
          %p465 = pneg %p207
        $region38: #{tpu_custom_call.1} parent=11 // pred_check_branch
          %467 = sbr.rel (%p465) target = $region40
        $region39: #{tpu_custom_call.1} parent=11 // pred_region
          %s469 = ssub.s32 512, 512
          %470 = vsyncadd [#allocation15], %s469
          %s471 = sshll.u32 [#allocation14], 4
          %s472 = int_to_ptr.vmem [resolvable:$true] %s471
          %477 = dma.hbm_to_vmem [thread:$0]  %s7, 512, %s472, [#allocation15], 128, 128, 8
        $region40: #{tpu_custom_call.1} parent=11 // pred_fallthru
          _
        // Predicated region
        $region41: #{tpu_custom_call.1} parent=11 // pred_check
          %p478 = pneg %p228
        $region42: #{tpu_custom_call.1} parent=11 // pred_check_branch
          %480 = sbr.rel (%p478) target = $region44
        $region43: #{tpu_custom_call.1} parent=11 // pred_region
          %s482 = ssub.s32 32, 32
          %483 = vsyncadd [#allocation15], %s482
          %s485 = sshll.u32 [#allocation16], 4
          %s486 = int_to_ptr.vmem [resolvable:$true] %s485
          %488 = dma.hbm_to_vmem [thread:$0]  %s8, 32, %s486, [#allocation15]
        $region44: #{tpu_custom_call.1} parent=11 // pred_fallthru
          _
        // Predicated region
        $region45: #{tpu_custom_call.1} parent=11 // pred_check
          %p489 = pneg %p249
        $region46: #{tpu_custom_call.1} parent=11 // pred_check_branch
          %491 = sbr.rel (%p489) target = $region48
        $region47: #{tpu_custom_call.1} parent=11 // pred_region
          %s493 = ssub.s32 1024, 1024
          %494 = vsyncadd [#allocation18], %s493
          %s495 = sshll.u32 [#allocation17], 4
          %s496 = int_to_ptr.vmem [resolvable:$true] %s495
          %501 = dma.hbm_to_vmem [thread:$0]  %s9, 1024, %s496, [#allocation18], 64, 64, 4
        $region48: #{tpu_custom_call.1} parent=11 // pred_fallthru
          _
        // Predicated region
        $region49: #{tpu_custom_call.1} parent=11 // pred_check
          %p502 = pneg %p270
        $region50: #{tpu_custom_call.1} parent=11 // pred_check_branch
          %504 = sbr.rel (%p502) target = $region52
        $region51: #{tpu_custom_call.1} parent=11 // pred_region
          %s506 = ssub.s32 16, 16
          %507 = vsyncadd [#allocation18], %s506
          %s509 = sshll.u32 [#allocation19], 4
          %s510 = int_to_ptr.vmem [resolvable:$true] %s509
          %512 = dma.hbm_to_vmem [thread:$0]  %s10, 16, %s510, [#allocation18]
        $region52: #{tpu_custom_call.1} parent=11 // pred_fallthru
          _
        // Predicated region
        $region53: #{tpu_custom_call.1} parent=11 // pred_check
          %p513 = pneg %p291
        $region54: #{tpu_custom_call.1} parent=11 // pred_check_branch
          %515 = sbr.rel (%p513) target = $region56
        $region55: #{tpu_custom_call.1} parent=11 // pred_region
          %s517 = ssub.s32 16, 16
          %518 = vsyncadd [#allocation21], %s517
          %s520 = sshll.u32 [#allocation20], 4
          %s521 = int_to_ptr.vmem [resolvable:$true] %s520
          %523 = dma.hbm_to_vmem [thread:$0]  %s11, 16, %s521, [#allocation21]
        $region56: #{tpu_custom_call.1} parent=11 // pred_fallthru
          _
        // Predicated region
        $region57: #{tpu_custom_call.1} parent=11 // pred_check
          %p524 = pneg %p312
        $region58: #{tpu_custom_call.1} parent=11 // pred_check_branch
          %526 = sbr.rel (%p524) target = $region60
        $region59: #{tpu_custom_call.1} parent=11 // pred_region
          %s528 = ssub.s32 16, 16
          %529 = vsyncadd [#allocation21], %s528
          %s531 = sshll.u32 [#allocation22], 4
          %s532 = int_to_ptr.vmem [resolvable:$true] %s531
          %534 = dma.hbm_to_vmem [thread:$0]  %s12, 16, %s532, [#allocation21]
        $region60: #{tpu_custom_call.1} parent=11 // pred_fallthru
          _
        // Predicated region
        $region61: #{tpu_custom_call.1} parent=11 // pred_check
          %p535 = pneg %p333
        $region62: #{tpu_custom_call.1} parent=11 // pred_check_branch
          %537 = sbr.rel (%p535) target = $region64
        $region63: #{tpu_custom_call.1} parent=11 // pred_region
          %s539 = ssub.s32 16, 16
          %540 = vsyncadd [#allocation24], %s539
          %s542 = sshll.u32 [#allocation23], 4
          %s543 = int_to_ptr.vmem [resolvable:$true] %s542
          %545 = dma.hbm_to_vmem [thread:$0]  %s13, 16, %s543, [#allocation24]
        $region64: #{tpu_custom_call.1} parent=11 // pred_fallthru
          _
        // Predicated region
        $region65: #{tpu_custom_call.1} parent=11 // pred_check
          %p546 = pneg %p354
        $region66: #{tpu_custom_call.1} parent=11 // pred_check_branch
          %548 = sbr.rel (%p546) target = $region68
        $region67: #{tpu_custom_call.1} parent=11 // pred_region
          %s550 = ssub.s32 16, 16
          %551 = vsyncadd [#allocation24], %s550
          %s553 = sshll.u32 [#allocation25], 4
          %s554 = int_to_ptr.vmem [resolvable:$true] %s553
          %556 = dma.hbm_to_vmem [thread:$0]  %s14, 16, %s554, [#allocation24]
        $region68: #{tpu_custom_call.1} parent=11 // pred_fallthru
          _
      $region12: #{tpu_custom_call.1} parent=5 // pred_fallthru
        _
      %p557 = scmp.lt.s32.totalorder %s34, 2
      // Predicated region
      $region69: #{tpu_custom_call.1} parent=5 // pred_check
        %p558 = pneg %p557
      $region70: #{tpu_custom_call.1} parent=5 // pred_check_branch
        %560 = sbr.rel (%p558) target = $region72
      $region71: #{tpu_custom_call.1} parent=5 // pred_region
        // Predicated region
        $region73: #{tpu_custom_call.1} parent=71 // pred_check
          %p561 = pneg %p54
        $region74: #{tpu_custom_call.1} parent=71 // pred_check_branch
          %563 = sbr.rel (%p561) target = $region76
        $region75: #{tpu_custom_call.1} parent=71 // pred_region
          %s564 = sand.u32 %s44, 1
          %s565 = scalar_lea.sflag [#allocation3], %s564
          %s566 = sand.u32 %s44, 1
          %s567 = smul.addr %s566, 8
          %s568 = scalar_lea.vmem [#allocation2], %s567
          %s570 = ssub.s32 128, 128
          %571 = vsyncadd %s565, %s570
          %s572 = smul.addr %s34, 128
          %s573 = scalar_lea.hbm %s0, %s572
          %s575 = sshll.u32 %s568, 4
          %s576 = int_to_ptr.vmem [resolvable:$true] %s575
          %578 = dma.hbm_to_vmem [thread:$0]  %s573, 128, %s576, %s565
        $region76: #{tpu_custom_call.1} parent=71 // pred_fallthru
          _
      $region72: #{tpu_custom_call.1} parent=5 // pred_fallthru
        _
      %p579 = scmp.le.s32.totalorder 1, %s34
      %p580 = scmp.lt.s32.totalorder %s34, 3
      %p581 = pnand %p579, %p580
      %p582 = pneg %p581
      // Predicated region
      $region77: #{tpu_custom_call.1} parent=5 // pred_check
        _
      $region78: #{tpu_custom_call.1} parent=5 // pred_check_branch
        %584 = sbr.rel (%p581) target = $region80
      $region79: #{tpu_custom_call.1} parent=5 // pred_region
        %s585 = ssub.s32 %s34, 1
        %s586 = sand.u32 %s47, 1
        %s587 = scalar_lea.sflag [#allocation3], %s586
        %s588 = sand.u32 %s47, 1
        %s589 = smul.addr %s588, 8
        %s590 = scalar_lea.vmem [#allocation2], %s589
        // Predicated region
        $region81: #{tpu_custom_call.1} parent=79 // pred_check
          %p591 = pneg %p60
        $region82: #{tpu_custom_call.1} parent=79 // pred_check_branch
          %593 = sbr.rel (%p591) target = $region84
        $region83: #{tpu_custom_call.1} parent=79 // pred_region
          %594 = dma.done %s587, 128
        $region84: #{tpu_custom_call.1} parent=79 // pred_fallthru
          _
        // Predicated region
        $region85: #{tpu_custom_call.1} parent=79 // pred_check
          %p595 = pneg %p81
        $region86: #{tpu_custom_call.1} parent=79 // pred_check_branch
          %597 = sbr.rel (%p595) target = $region88
        $region87: #{tpu_custom_call.1} parent=79 // pred_region
          %598 = dma.done [#allocation6], 128
        $region88: #{tpu_custom_call.1} parent=79 // pred_fallthru
          _
        // Predicated region
        $region89: #{tpu_custom_call.1} parent=79 // pred_check
          %p599 = pneg %p102
        $region90: #{tpu_custom_call.1} parent=79 // pred_check_branch
          %601 = sbr.rel (%p599) target = $region92
        $region91: #{tpu_custom_call.1} parent=79 // pred_region
          %602 = dma.done [#allocation6], 128
        $region92: #{tpu_custom_call.1} parent=79 // pred_fallthru
          _
        // Predicated region
        $region93: #{tpu_custom_call.1} parent=79 // pred_check
          %p603 = pneg %p123
        $region94: #{tpu_custom_call.1} parent=79 // pred_check_branch
          %605 = sbr.rel (%p603) target = $region96
        $region95: #{tpu_custom_call.1} parent=79 // pred_region
          %606 = dma.done [#allocation9], 256
        $region96: #{tpu_custom_call.1} parent=79 // pred_fallthru
          _
        // Predicated region
        $region97: #{tpu_custom_call.1} parent=79 // pred_check
          %p607 = pneg %p144
        $region98: #{tpu_custom_call.1} parent=79 // pred_check_branch
          %609 = sbr.rel (%p607) target = $region100
        $region99: #{tpu_custom_call.1} parent=79 // pred_region
          %610 = dma.done [#allocation9], 16
        $region100: #{tpu_custom_call.1} parent=79 // pred_fallthru
          _
        // Predicated region
        $region101: #{tpu_custom_call.1} parent=79 // pred_check
          %p611 = pneg %p165
        $region102: #{tpu_custom_call.1} parent=79 // pred_check_branch
          %613 = sbr.rel (%p611) target = $region104
        $region103: #{tpu_custom_call.1} parent=79 // pred_region
          %614 = dma.done [#allocation12], 256
        $region104: #{tpu_custom_call.1} parent=79 // pred_fallthru
          _
        // Predicated region
        $region105: #{tpu_custom_call.1} parent=79 // pred_check
          %p615 = pneg %p186
        $region106: #{tpu_custom_call.1} parent=79 // pred_check_branch
          %617 = sbr.rel (%p615) target = $region108
        $region107: #{tpu_custom_call.1} parent=79 // pred_region
          %618 = dma.done [#allocation12], 16
        $region108: #{tpu_custom_call.1} parent=79 // pred_fallthru
          _
        // Predicated region
        $region109: #{tpu_custom_call.1} parent=79 // pred_check
          %p619 = pneg %p207
        $region110: #{tpu_custom_call.1} parent=79 // pred_check_branch
          %621 = sbr.rel (%p619) target = $region112
        $region111: #{tpu_custom_call.1} parent=79 // pred_region
          %622 = dma.done [#allocation15], 512
        $region112: #{tpu_custom_call.1} parent=79 // pred_fallthru
          _
        // Predicated region
        $region113: #{tpu_custom_call.1} parent=79 // pred_check
          %p623 = pneg %p228
        $region114: #{tpu_custom_call.1} parent=79 // pred_check_branch
          %625 = sbr.rel (%p623) target = $region116
        $region115: #{tpu_custom_call.1} parent=79 // pred_region
          %626 = dma.done [#allocation15], 32
        $region116: #{tpu_custom_call.1} parent=79 // pred_fallthru
          _
        // Predicated region
        $region117: #{tpu_custom_call.1} parent=79 // pred_check
          %p627 = pneg %p249
        $region118: #{tpu_custom_call.1} parent=79 // pred_check_branch
          %629 = sbr.rel (%p627) target = $region120
        $region119: #{tpu_custom_call.1} parent=79 // pred_region
          %630 = dma.done [#allocation18], 1024
        $region120: #{tpu_custom_call.1} parent=79 // pred_fallthru
          _
        // Predicated region
        $region121: #{tpu_custom_call.1} parent=79 // pred_check
          %p631 = pneg %p270
        $region122: #{tpu_custom_call.1} parent=79 // pred_check_branch
          %633 = sbr.rel (%p631) target = $region124
        $region123: #{tpu_custom_call.1} parent=79 // pred_region
          %634 = dma.done [#allocation18], 16
        $region124: #{tpu_custom_call.1} parent=79 // pred_fallthru
          _
        // Predicated region
        $region125: #{tpu_custom_call.1} parent=79 // pred_check
          %p635 = pneg %p291
        $region126: #{tpu_custom_call.1} parent=79 // pred_check_branch
          %637 = sbr.rel (%p635) target = $region128
        $region127: #{tpu_custom_call.1} parent=79 // pred_region
          %638 = dma.done [#allocation21], 16
        $region128: #{tpu_custom_call.1} parent=79 // pred_fallthru
          _
        // Predicated region
        $region129: #{tpu_custom_call.1} parent=79 // pred_check
          %p639 = pneg %p312
        $region130: #{tpu_custom_call.1} parent=79 // pred_check_branch
          %641 = sbr.rel (%p639) target = $region132
        $region131: #{tpu_custom_call.1} parent=79 // pred_region
          %642 = dma.done [#allocation21], 16
        $region132: #{tpu_custom_call.1} parent=79 // pred_fallthru
          _
        // Predicated region
        $region133: #{tpu_custom_call.1} parent=79 // pred_check
          %p643 = pneg %p333
        $region134: #{tpu_custom_call.1} parent=79 // pred_check_branch
          %645 = sbr.rel (%p643) target = $region136
        $region135: #{tpu_custom_call.1} parent=79 // pred_region
          %646 = dma.done [#allocation24], 16
        $region136: #{tpu_custom_call.1} parent=79 // pred_fallthru
          _
        // Predicated region
        $region137: #{tpu_custom_call.1} parent=79 // pred_check
          %p647 = pneg %p354
        $region138: #{tpu_custom_call.1} parent=79 // pred_check_branch
          %649 = sbr.rel (%p647) target = $region140
        $region139: #{tpu_custom_call.1} parent=79 // pred_region
          %650 = dma.done [#allocation24], 16
        $region140: #{tpu_custom_call.1} parent=79 // pred_fallthru
          _
        %s651 = sand.u32 %s47, 1
        %s652 = scalar_lea.sflag [#allocation3], %s651
        %s653 = sand.u32 %s47, 1
        %s654 = smul.addr %s653, 8
        %s655 = scalar_lea.vmem [#allocation2], %s654
        %p656 = pneg %p60
        %p657 = pneg %p57
        %p658 = pneg %p81
        %p659 = pneg %p78
        %p660 = pneg %p102
        %p661 = pneg %p99
        %p662 = pneg %p123
        %p663 = pneg %p120
        %p664 = pneg %p144
        %p665 = pneg %p141
        %p666 = pneg %p165
        %p667 = pneg %p162
        %p668 = pneg %p186
        %p669 = pneg %p183
        %p670 = pneg %p207
        %p671 = pneg %p204
        %p672 = pneg %p228
        %p673 = pneg %p225
        %p674 = pneg %p249
        %p675 = pneg %p246
        %p676 = pneg %p270
        %p677 = pneg %p267
        %p678 = pneg %p291
        %p679 = pneg %p288
        %p680 = pneg %p312
        %p681 = pneg %p309
        %p682 = pneg %p333
        %p683 = pneg %p330
        %p684 = pneg %p354
        %p685 = pneg %p351
        %p686 = pneg %p380
        %p687 = pneg %p377
        %s688 = sand.u32 %s367, 1
        %s689 = scalar_lea.sflag [#allocation4], %s688
        %s690 = sand.u32 %s367, 1
        %s691 = smul.addr %s690, 8
        %s692 = scalar_lea.vmem [#allocation26], %s691
        %v694 = vld [vmem:[%s590] sm:$0xff]
        %v695 = vpack.c.bf16 %v694, %v694
        %v696 = vld [vmem:[#allocation8] sm:$0xf]
        %v697 = vld [vmem:[#allocation8 + $0x4] sm:$0xf]
        %v698 = vld [vmem:[#allocation8 + $0x8] sm:$0xf]
        %v699 = vld [vmem:[#allocation8 + $0xc] sm:$0xf]
        %v700 = vld [vmem:[#allocation10] sm:$0x1]
        %v702 = vlaneseq
        %v703 = vshrl.u32 %v702, 7
        %v704 = vsub.s32 0, %v703
        %v705 = vrot.slane %v700, %v704
        %v711 = vunpack.c.l.b16 %v696
        %v712 = vunpack.c.l.b16 %v697
        %v713 = vunpack.c.l.b16 %v698
        %v714 = vunpack.c.l.b16 %v699
        %v715 = vpack.c.b16 %v712, %v711
        %v716 = vpack.c.b16 %v714, %v713
        %vm719 = vcmask 261120
        %v721 = vsel %vm719, %v695, 0
        %723 = vmatprep.subr.bf16.mxu0 0
        %724 = vmatpush1.bf16.msra.mxu0 %v715
        %725 = vmatprep.subr.bf16.mxu0 0
        %726 = vmatpush1.bf16.msra.mxu0 %v716
        %727 = vmatprep.subr.bf16.mxu0 0
        %728 = vmatpush1.bf16.msra.mxu0 0
        %729 = vmatprep.subr.bf16.mxu0 0
        %730 = vmatpush1.bf16.msra.mxu0 0
        %731 = vmatprep.subr.bf16.mxu0 0
        %732 = vmatpush1.bf16.msra.mxu0 0
        %733 = vmatprep.subr.bf16.mxu0 0
        %734 = vmatpush1.bf16.msra.mxu0 0
        %735 = vmatprep.subr.bf16.mxu0 0
        %736 = vmatpush1.bf16.msra.mxu0 0
        %737 = vmatprep.subr.bf16.mxu0 0
        %738 = vmatpush1.bf16.msra.mxu0 0
        %739 = vmatprep.subr.bf16.mxu0 0
        %740 = vmatpush1.bf16.msra.mxu0 0
        %741 = vmatprep.subr.bf16.mxu0 0
        %742 = vmatpush1.bf16.msra.mxu0 0
        %743 = vmatprep.subr.bf16.mxu0 0
        %744 = vmatpush1.bf16.msra.mxu0 0
        %745 = vmatprep.subr.bf16.mxu0 0
        %746 = vmatpush1.bf16.msra.mxu0 0
        %747 = vmatprep.subr.bf16.mxu0 0
        %748 = vmatpush1.bf16.msra.mxu0 0
        %749 = vmatprep.subr.bf16.mxu0 0
        %750 = vmatpush1.bf16.msra.mxu0 0
        %751 = vmatprep.subr.bf16.mxu0 0
        %752 = vmatpush1.bf16.msra.mxu0 0
        %753 = vmatprep.subr.bf16.mxu0 0
        %754 = vmatpush1.bf16.msra.mxu0 0
        %755 = vmatprep.mubr.bf16.mxu0 0
        %756 = vmatmul.mubr.bf16.gmra.mrb[0].mxu0 %v721
        %v757 = vpop.f32.mrb[0].mxu0
        %v758 = vadd.f32 %v705, %v757
        %v759 = vpop.f32.mrb[0].mxu0
        %v760 = vpop.f32.mrb[0].mxu0
        %v761 = vpop.f32.mrb[0].mxu0
        %762 = vdwg.mxu0
        %764 = vrot.lane.b32.xlu0 %v758, 120
        %v765 = vpop.permute.xlu0 %764
        %767 = vrot.lane.b32.xlu0 %v758, 112
        %v768 = vpop.permute.xlu0 %767
        %770 = vrot.lane.b32.xlu0 %v758, 104
        %v771 = vpop.permute.xlu0 %770
        %v773 = vld [vmem:[#allocation5] sm:$0xff]
        %v774 = vld [vmem:[#allocation7] sm:$0xff]
        %v775 = vmul.f32 %v758, %v773
        %v776 = vmul.f32 %v765, %v773
        %v777 = vmul.f32 %v768, %v773
        %v778 = vmul.f32 %v771, %v773
        %780 = vrot.lane.b32.xlu0 %v774, 4
        %v781 = vpop.permute.xlu0 %780
        %v783 = vmul.f32 %v758, %v781
        %v784 = vmul.f32 %v765, %v781
        %v785 = vmul.f32 %v768, %v781
        %v786 = vmul.f32 %v771, %v781
        %791 = vrot.lane.b32.xlu0 %v783, 124
        %v792 = vpop.permute.xlu0 %791
        %793 = vrot.lane.b32.xlu0 %v784, 124
        %v794 = vpop.permute.xlu0 %793
        %795 = vrot.lane.b32.xlu0 %v785, 124
        %v796 = vpop.permute.xlu0 %795
        %797 = vrot.lane.b32.xlu0 %v786, 124
        %v798 = vpop.permute.xlu0 %797
        %v803 = vsub.f32 %v775, %v792
        %v804 = vsub.f32 %v776, %v794
        %v805 = vsub.f32 %v777, %v796
        %v806 = vsub.f32 %v778, %v798
        %v807 = vmul.f32 %v758, %v774
        %v808 = vmul.f32 %v765, %v774
        %v809 = vmul.f32 %v768, %v774
        %v810 = vmul.f32 %v771, %v774
        %812 = vrot.lane.b32.xlu0 %v773, 4
        %v813 = vpop.permute.xlu0 %812
        %v815 = vmul.f32 %v758, %v813
        %v816 = vmul.f32 %v765, %v813
        %v817 = vmul.f32 %v768, %v813
        %v818 = vmul.f32 %v771, %v813
        %823 = vrot.lane.b32.xlu0 %v815, 124
        %v824 = vpop.permute.xlu0 %823
        %825 = vrot.lane.b32.xlu0 %v816, 124
        %v826 = vpop.permute.xlu0 %825
        %827 = vrot.lane.b32.xlu0 %v817, 124
        %v828 = vpop.permute.xlu0 %827
        %829 = vrot.lane.b32.xlu0 %v818, 124
        %v830 = vpop.permute.xlu0 %829
        %v835 = vadd.f32 %v807, %v824
        %v836 = vadd.f32 %v808, %v826
        %v837 = vadd.f32 %v809, %v828
        %v838 = vadd.f32 %v810, %v830
        %843 = vrot.lane.b32.xlu0 %v835, 4
        %v844 = vpop.permute.xlu0 %843
        %845 = vrot.lane.b32.xlu0 %v836, 4
        %v846 = vpop.permute.xlu0 %845
        %847 = vrot.lane.b32.xlu0 %v837, 4
        %v848 = vpop.permute.xlu0 %847
        %849 = vrot.lane.b32.xlu0 %v838, 4
        %v850 = vpop.permute.xlu0 %849
        %vm855 = vcmask 31744
        %v856 = vsel %vm855, %v803, %v844
        %v857 = vsel %vm855, %v804, %v846
        %v858 = vsel %vm855, %v805, %v848
        %v859 = vsel %vm855, %v806, %v850
        %v860 = vpack.c.bf16 %v856, %v856
        %v861 = vpack.c.bf16 %v857, %v857
        %v862 = vpack.c.bf16 %v858, %v858
        %v863 = vpack.c.bf16 %v859, %v859
        %864 = vrot.lane.b32.xlu0 %v773, 32
        %v865 = vpop.permute.xlu0 %864
        %v867 = vmul.f32 %v758, %v865
        %v868 = vmul.f32 %v765, %v865
        %v869 = vmul.f32 %v768, %v865
        %v870 = vmul.f32 %v771, %v865
        %871 = vrot.lane.b32.xlu0 %v774, 36
        %v872 = vpop.permute.xlu0 %871
        %v874 = vmul.f32 %v758, %v872
        %v875 = vmul.f32 %v765, %v872
        %v876 = vmul.f32 %v768, %v872
        %v877 = vmul.f32 %v771, %v872
        %882 = vrot.lane.b32.xlu0 %v874, 124
        %v883 = vpop.permute.xlu0 %882
        %884 = vrot.lane.b32.xlu0 %v875, 124
        %v885 = vpop.permute.xlu0 %884
        %886 = vrot.lane.b32.xlu0 %v876, 124
        %v887 = vpop.permute.xlu0 %886
        %888 = vrot.lane.b32.xlu0 %v877, 124
        %v889 = vpop.permute.xlu0 %888
        %v894 = vsub.f32 %v867, %v883
        %v895 = vsub.f32 %v868, %v885
        %v896 = vsub.f32 %v869, %v887
        %v897 = vsub.f32 %v870, %v889
        %898 = vrot.lane.b32.xlu0 %v774, 32
        %v899 = vpop.permute.xlu0 %898
        %v901 = vmul.f32 %v758, %v899
        %v902 = vmul.f32 %v765, %v899
        %v903 = vmul.f32 %v768, %v899
        %v904 = vmul.f32 %v771, %v899
        %905 = vrot.lane.b32.xlu0 %v773, 36
        %v906 = vpop.permute.xlu0 %905
        %v908 = vmul.f32 %v758, %v906
        %v909 = vmul.f32 %v765, %v906
        %v910 = vmul.f32 %v768, %v906
        %v911 = vmul.f32 %v771, %v906
        %916 = vrot.lane.b32.xlu0 %v908, 124
        %v917 = vpop.permute.xlu0 %916
        %918 = vrot.lane.b32.xlu0 %v909, 124
        %v919 = vpop.permute.xlu0 %918
        %920 = vrot.lane.b32.xlu0 %v910, 124
        %v921 = vpop.permute.xlu0 %920
        %922 = vrot.lane.b32.xlu0 %v911, 124
        %v923 = vpop.permute.xlu0 %922
        %v928 = vadd.f32 %v901, %v917
        %v929 = vadd.f32 %v902, %v919
        %v930 = vadd.f32 %v903, %v921
        %v931 = vadd.f32 %v904, %v923
        %936 = vrot.lane.b32.xlu0 %v894, 96
        %v937 = vpop.permute.xlu0 %936
        %938 = vrot.lane.b32.xlu0 %v895, 96
        %v939 = vpop.permute.xlu0 %938
        %940 = vrot.lane.b32.xlu0 %v896, 96
        %v941 = vpop.permute.xlu0 %940
        %942 = vrot.lane.b32.xlu0 %v897, 96
        %v943 = vpop.permute.xlu0 %942
        %952 = vrot.lane.b32.xlu0 %v928, 100
        %v953 = vpop.permute.xlu0 %952
        %954 = vrot.lane.b32.xlu0 %v929, 100
        %v955 = vpop.permute.xlu0 %954
        %956 = vrot.lane.b32.xlu0 %v930, 100
        %v957 = vpop.permute.xlu0 %956
        %958 = vrot.lane.b32.xlu0 %v931, 100
        %v959 = vpop.permute.xlu0 %958
        %v964 = vsel %vm855, %v937, %v953
        %v965 = vsel %vm855, %v939, %v955
        %v966 = vsel %vm855, %v941, %v957
        %v967 = vsel %vm855, %v943, %v959
        %v968 = vpack.c.bf16 %v964, %v964
        %v969 = vpack.c.bf16 %v965, %v965
        %v970 = vpack.c.bf16 %v966, %v966
        %v971 = vpack.c.bf16 %v967, %v967
        %vm972 = vcmask 64512
        %v974 = vsel %vm972, %v860, 0
        %v977 = vsel %vm972, %v968, 0
        %979 = vmatprep.subr.bf16.mxu0 0
        %980 = vmatpush1.bf16.xpose.msra.mxu0 %v977
        %981 = vmatprep.subr.bf16.mxu0 0
        %982 = vmatpush1.bf16.xpose.msra.mxu0 0
        %983 = vmatprep.subr.bf16.mxu0 0
        %984 = vmatpush1.bf16.xpose.msra.mxu0 0
        %985 = vmatprep.subr.bf16.mxu0 0
        %986 = vmatpush1.bf16.xpose.msra.mxu0 0
        %987 = vmatprep.subr.bf16.mxu0 0
        %988 = vmatpush1.bf16.xpose.msra.mxu0 0
        %989 = vmatprep.subr.bf16.mxu0 0
        %990 = vmatpush1.bf16.xpose.msra.mxu0 0
        %991 = vmatprep.subr.bf16.mxu0 0
        %992 = vmatpush1.bf16.xpose.msra.mxu0 0
        %993 = vmatprep.subr.bf16.mxu0 0
        %994 = vmatpush1.bf16.xpose.msra.mxu0 0
        %995 = vmatprep.subr.bf16.mxu0 0
        %996 = vmatpush1.bf16.xpose.msra.mxu0 0
        %997 = vmatprep.subr.bf16.mxu0 0
        %998 = vmatpush1.bf16.xpose.msra.mxu0 0
        %999 = vmatprep.subr.bf16.mxu0 0
        %1000 = vmatpush1.bf16.xpose.msra.mxu0 0
        %1001 = vmatprep.subr.bf16.mxu0 0
        %1002 = vmatpush1.bf16.xpose.msra.mxu0 0
        %1003 = vmatprep.subr.bf16.mxu0 0
        %1004 = vmatpush1.bf16.xpose.msra.mxu0 0
        %1005 = vmatprep.subr.bf16.mxu0 0
        %1006 = vmatpush1.bf16.xpose.msra.mxu0 0
        %1007 = vmatprep.subr.bf16.mxu0 0
        %1008 = vmatpush1.bf16.xpose.msra.mxu0 0
        %1009 = vmatprep.subr.bf16.mxu0 0
        %1010 = vmatpush1.bf16.xpose.msra.mxu0 0
        %1011 = vmatprep.mubr.bf16.mxu0 0
        %1012 = vmatmul.mubr.bf16.gmra.mrb[0].mxu0 %v974
        %v1013 = vpop.f32.mrb[0].mxu0
        %v1014 = vadd.f32 0.0, %v1013
        %v1015 = vpop.f32.mrb[0].mxu0
        %v1016 = vpop.f32.mrb[0].mxu0
        %v1017 = vpop.f32.mrb[0].mxu0
        %1018 = vdwg.mxu0
        %v1020 = vsel %vm972, %v861, 0
        %v1023 = vsel %vm972, %v969, 0
        %1025 = vmatprep.subr.bf16.mxu0 0
        %1026 = vmatpush1.bf16.xpose.msra.mxu0 %v1023
        %1027 = vmatprep.subr.bf16.mxu0 0
        %1028 = vmatpush1.bf16.xpose.msra.mxu0 0
        %1029 = vmatprep.subr.bf16.mxu0 0
        %1030 = vmatpush1.bf16.xpose.msra.mxu0 0
        %1031 = vmatprep.subr.bf16.mxu0 0
        %1032 = vmatpush1.bf16.xpose.msra.mxu0 0
        %1033 = vmatprep.subr.bf16.mxu0 0
        %1034 = vmatpush1.bf16.xpose.msra.mxu0 0
        %1035 = vmatprep.subr.bf16.mxu0 0
        %1036 = vmatpush1.bf16.xpose.msra.mxu0 0
        %1037 = vmatprep.subr.bf16.mxu0 0
        %1038 = vmatpush1.bf16.xpose.msra.mxu0 0
        %1039 = vmatprep.subr.bf16.mxu0 0
        %1040 = vmatpush1.bf16.xpose.msra.mxu0 0
        %1041 = vmatprep.subr.bf16.mxu0 0
        %1042 = vmatpush1.bf16.xpose.msra.mxu0 0
        %1043 = vmatprep.subr.bf16.mxu0 0
        %1044 = vmatpush1.bf16.xpose.msra.mxu0 0
        %1045 = vmatprep.subr.bf16.mxu0 0
        %1046 = vmatpush1.bf16.xpose.msra.mxu0 0
        %1047 = vmatprep.subr.bf16.mxu0 0
        %1048 = vmatpush1.bf16.xpose.msra.mxu0 0
        %1049 = vmatprep.subr.bf16.mxu0 0
        %1050 = vmatpush1.bf16.xpose.msra.mxu0 0
        %1051 = vmatprep.subr.bf16.mxu0 0
        %1052 = vmatpush1.bf16.xpose.msra.mxu0 0
        %1053 = vmatprep.subr.bf16.mxu0 0
        %1054 = vmatpush1.bf16.xpose.msra.mxu0 0
        %1055 = vmatprep.subr.bf16.mxu0 0
        %1056 = vmatpush1.bf16.xpose.msra.mxu0 0
        %1057 = vmatprep.mubr.bf16.mxu0 0
        %1058 = vmatmul.mubr.bf16.gmra.mrb[0].mxu0 %v1020
        %v1059 = vpop.f32.mrb[0].mxu0
        %v1060 = vadd.f32 0.0, %v1059
        %v1061 = vpop.f32.mrb[0].mxu0
        %v1062 = vpop.f32.mrb[0].mxu0
        %v1063 = vpop.f32.mrb[0].mxu0
        %1064 = vdwg.mxu0
        %v1066 = vsel %vm972, %v862, 0
        %v1069 = vsel %vm972, %v970, 0
        %1071 = vmatprep.subr.bf16.mxu0 0
        %1072 = vmatpush1.bf16.xpose.msra.mxu0 %v1069
        %1073 = vmatprep.subr.bf16.mxu0 0
        %1074 = vmatpush1.bf16.xpose.msra.mxu0 0
        %1075 = vmatprep.subr.bf16.mxu0 0
        %1076 = vmatpush1.bf16.xpose.msra.mxu0 0
        %1077 = vmatprep.subr.bf16.mxu0 0
        %1078 = vmatpush1.bf16.xpose.msra.mxu0 0
        %1079 = vmatprep.subr.bf16.mxu0 0
        %1080 = vmatpush1.bf16.xpose.msra.mxu0 0
        %1081 = vmatprep.subr.bf16.mxu0 0
        %1082 = vmatpush1.bf16.xpose.msra.mxu0 0
        %1083 = vmatprep.subr.bf16.mxu0 0
        %1084 = vmatpush1.bf16.xpose.msra.mxu0 0
        %1085 = vmatprep.subr.bf16.mxu0 0
        %1086 = vmatpush1.bf16.xpose.msra.mxu0 0
        %1087 = vmatprep.subr.bf16.mxu0 0
        %1088 = vmatpush1.bf16.xpose.msra.mxu0 0
        %1089 = vmatprep.subr.bf16.mxu0 0
        %1090 = vmatpush1.bf16.xpose.msra.mxu0 0
        %1091 = vmatprep.subr.bf16.mxu0 0
        %1092 = vmatpush1.bf16.xpose.msra.mxu0 0
        %1093 = vmatprep.subr.bf16.mxu0 0
        %1094 = vmatpush1.bf16.xpose.msra.mxu0 0
        %1095 = vmatprep.subr.bf16.mxu0 0
        %1096 = vmatpush1.bf16.xpose.msra.mxu0 0
        %1097 = vmatprep.subr.bf16.mxu0 0
        %1098 = vmatpush1.bf16.xpose.msra.mxu0 0
        %1099 = vmatprep.subr.bf16.mxu0 0
        %1100 = vmatpush1.bf16.xpose.msra.mxu0 0
        %1101 = vmatprep.subr.bf16.mxu0 0
        %1102 = vmatpush1.bf16.xpose.msra.mxu0 0
        %1103 = vmatprep.mubr.bf16.mxu0 0
        %1104 = vmatmul.mubr.bf16.gmra.mrb[0].mxu0 %v1066
        %v1105 = vpop.f32.mrb[0].mxu0
        %v1106 = vadd.f32 0.0, %v1105
        %v1107 = vpop.f32.mrb[0].mxu0
        %v1108 = vpop.f32.mrb[0].mxu0
        %v1109 = vpop.f32.mrb[0].mxu0
        %1110 = vdwg.mxu0
        %v1112 = vsel %vm972, %v863, 0
        %v1115 = vsel %vm972, %v971, 0
        %1117 = vmatprep.subr.bf16.mxu0 0
        %1118 = vmatpush1.bf16.xpose.msra.mxu0 %v1115
        %1119 = vmatprep.subr.bf16.mxu0 0
        %1120 = vmatpush1.bf16.xpose.msra.mxu0 0
        %1121 = vmatprep.subr.bf16.mxu0 0
        %1122 = vmatpush1.bf16.xpose.msra.mxu0 0
        %1123 = vmatprep.subr.bf16.mxu0 0
        %1124 = vmatpush1.bf16.xpose.msra.mxu0 0
        %1125 = vmatprep.subr.bf16.mxu0 0
        %1126 = vmatpush1.bf16.xpose.msra.mxu0 0
        %1127 = vmatprep.subr.bf16.mxu0 0
        %1128 = vmatpush1.bf16.xpose.msra.mxu0 0
        %1129 = vmatprep.subr.bf16.mxu0 0
        %1130 = vmatpush1.bf16.xpose.msra.mxu0 0
        %1131 = vmatprep.subr.bf16.mxu0 0
        %1132 = vmatpush1.bf16.xpose.msra.mxu0 0
        %1133 = vmatprep.subr.bf16.mxu0 0
        %1134 = vmatpush1.bf16.xpose.msra.mxu0 0
        %1135 = vmatprep.subr.bf16.mxu0 0
        %1136 = vmatpush1.bf16.xpose.msra.mxu0 0
        %1137 = vmatprep.subr.bf16.mxu0 0
        %1138 = vmatpush1.bf16.xpose.msra.mxu0 0
        %1139 = vmatprep.subr.bf16.mxu0 0
        %1140 = vmatpush1.bf16.xpose.msra.mxu0 0
        %1141 = vmatprep.subr.bf16.mxu0 0
        %1142 = vmatpush1.bf16.xpose.msra.mxu0 0
        %1143 = vmatprep.subr.bf16.mxu0 0
        %1144 = vmatpush1.bf16.xpose.msra.mxu0 0
        %1145 = vmatprep.subr.bf16.mxu0 0
        %1146 = vmatpush1.bf16.xpose.msra.mxu0 0
        %1147 = vmatprep.subr.bf16.mxu0 0
        %1148 = vmatpush1.bf16.xpose.msra.mxu0 0
        %1149 = vmatprep.mubr.bf16.mxu0 0
        %1150 = vmatmul.mubr.bf16.gmra.mrb[0].mxu0 %v1112
        %v1151 = vpop.f32.mrb[0].mxu0
        %v1152 = vadd.f32 0.0, %v1151
        %v1153 = vpop.f32.mrb[0].mxu0
        %v1154 = vpop.f32.mrb[0].mxu0
        %v1155 = vpop.f32.mrb[0].mxu0
        %1156 = vdwg.mxu0
        %v1157 = vmul.f32 %v1014, 0.35355338
        %v1158 = vmul.f32 %v1060, 0.35355338
        %v1159 = vmul.f32 %v1106, 0.35355338
        %v1160 = vmul.f32 %v1152, 0.35355338
        %v1161 = vsel %vm972, %v1157, -inf
        %1162 = vmax.xlane.f32.xlu0 %v1161
        %v1163 = vpop.xlane.xlu0 %1162
        %v1164 = vsel %vm972, %v1158, -inf
        %1165 = vmax.xlane.f32.xlu0 %v1164
        %v1166 = vpop.xlane.xlu0 %1165
        %v1167 = vsel %vm972, %v1159, -inf
        %1168 = vmax.xlane.f32.xlu0 %v1167
        %v1169 = vpop.xlane.xlu0 %1168
        %v1170 = vsel %vm972, %v1160, -inf
        %1171 = vmax.xlane.f32.xlu0 %v1170
        %v1172 = vpop.xlane.xlu0 %1171
        %v1173 = vsub.f32 %v1157, %v1163
        %v1174 = vsub.f32 %v1158, %v1166
        %v1175 = vsub.f32 %v1159, %v1169
        %v1176 = vsub.f32 %v1160, %v1172
        %v1177 = vmul.f32 %v1173, 1.442695
        %v1178 = vpow.pop %v1177
        %v1179 = vmul.f32 %v1174, 1.442695
        %v1180 = vpow.pop %v1179
        %v1181 = vmul.f32 %v1175, 1.442695
        %v1182 = vpow.pop %v1181
        %v1183 = vmul.f32 %v1176, 1.442695
        %v1184 = vpow.pop %v1183
        %v1185 = vsel %vm972, %v1178, 0.0
        %1186 = vadd.xlane.f32.xlu0 %v1185
        %v1187 = vpop.xlane.xlu0 %1186
        %v1188 = vsel %vm972, %v1180, 0.0
        %1189 = vadd.xlane.f32.xlu0 %v1188
        %v1190 = vpop.xlane.xlu0 %1189
        %v1191 = vsel %vm972, %v1182, 0.0
        %1192 = vadd.xlane.f32.xlu0 %v1191
        %v1193 = vpop.xlane.xlu0 %1192
        %v1194 = vsel %vm972, %v1184, 0.0
        %1195 = vadd.xlane.f32.xlu0 %v1194
        %v1196 = vpop.xlane.xlu0 %1195
        %v1197 = vrcp.pop %v1187
        %v1198 = vrcp.pop %v1190
        %v1199 = vrcp.pop %v1193
        %v1200 = vrcp.pop %v1196
        %v1201 = vmul.f32 %v1178, %v1197
        %v1202 = vmul.f32 %v1180, %v1198
        %v1203 = vmul.f32 %v1182, %v1199
        %v1204 = vmul.f32 %v1184, %v1200
        %v1205 = vpack.c.bf16 %v1201, %v1201
        %v1206 = vpack.c.bf16 %v1202, %v1202
        %v1207 = vpack.c.bf16 %v1203, %v1203
        %v1208 = vpack.c.bf16 %v1204, %v1204
        %v1209 = vpack.c.bf16 %v758, %v758
        %v1210 = vpack.c.bf16 %v765, %v765
        %v1211 = vpack.c.bf16 %v768, %v768
        %v1212 = vpack.c.bf16 %v771, %v771
        %1214 = vrot.lane.b32.xlu0 %v1209, 64
        %v1215 = vpop.permute.xlu0 %1214
        %v1217 = vsel %vm972, %v1205, 0
        %vm1219 = vcmask 1043456
        %v1221 = vsel %vm1219, %v1215, 0
        %1223 = vmatprep.subr.bf16.mxu0 0
        %1224 = vmatpush1.bf16.msra.mxu0 %v1221
        %1225 = vmatprep.subr.bf16.mxu0 0
        %1226 = vmatpush1.bf16.msra.mxu0 0
        %1227 = vmatprep.subr.bf16.mxu0 0
        %1228 = vmatpush1.bf16.msra.mxu0 0
        %1229 = vmatprep.subr.bf16.mxu0 0
        %1230 = vmatpush1.bf16.msra.mxu0 0
        %1231 = vmatprep.subr.bf16.mxu0 0
        %1232 = vmatpush1.bf16.msra.mxu0 0
        %1233 = vmatprep.subr.bf16.mxu0 0
        %1234 = vmatpush1.bf16.msra.mxu0 0
        %1235 = vmatprep.subr.bf16.mxu0 0
        %1236 = vmatpush1.bf16.msra.mxu0 0
        %1237 = vmatprep.subr.bf16.mxu0 0
        %1238 = vmatpush1.bf16.msra.mxu0 0
        %1239 = vmatprep.subr.bf16.mxu0 0
        %1240 = vmatpush1.bf16.msra.mxu0 0
        %1241 = vmatprep.subr.bf16.mxu0 0
        %1242 = vmatpush1.bf16.msra.mxu0 0
        %1243 = vmatprep.subr.bf16.mxu0 0
        %1244 = vmatpush1.bf16.msra.mxu0 0
        %1245 = vmatprep.subr.bf16.mxu0 0
        %1246 = vmatpush1.bf16.msra.mxu0 0
        %1247 = vmatprep.subr.bf16.mxu0 0
        %1248 = vmatpush1.bf16.msra.mxu0 0
        %1249 = vmatprep.subr.bf16.mxu0 0
        %1250 = vmatpush1.bf16.msra.mxu0 0
        %1251 = vmatprep.subr.bf16.mxu0 0
        %1252 = vmatpush1.bf16.msra.mxu0 0
        %1253 = vmatprep.subr.bf16.mxu0 0
        %1254 = vmatpush1.bf16.msra.mxu0 0
        %1255 = vmatprep.mubr.bf16.mxu0 0
        %1256 = vmatmul.mubr.bf16.gmra.mrb[0].mxu0 %v1217
        %v1257 = vpop.f32.mrb[0].mxu0
        %v1258 = vadd.f32 0.0, %v1257
        %v1259 = vpop.f32.mrb[0].mxu0
        %v1260 = vpop.f32.mrb[0].mxu0
        %v1261 = vpop.f32.mrb[0].mxu0
        %1262 = vdwg.mxu0
        %1264 = vrot.lane.b32.xlu0 %v1210, 64
        %v1265 = vpop.permute.xlu0 %1264
        %v1267 = vsel %vm972, %v1206, 0
        %v1270 = vsel %vm1219, %v1265, 0
        %1272 = vmatprep.subr.bf16.mxu0 0
        %1273 = vmatpush1.bf16.msra.mxu0 %v1270
        %1274 = vmatprep.subr.bf16.mxu0 0
        %1275 = vmatpush1.bf16.msra.mxu0 0
        %1276 = vmatprep.subr.bf16.mxu0 0
        %1277 = vmatpush1.bf16.msra.mxu0 0
        %1278 = vmatprep.subr.bf16.mxu0 0
        %1279 = vmatpush1.bf16.msra.mxu0 0
        %1280 = vmatprep.subr.bf16.mxu0 0
        %1281 = vmatpush1.bf16.msra.mxu0 0
        %1282 = vmatprep.subr.bf16.mxu0 0
        %1283 = vmatpush1.bf16.msra.mxu0 0
        %1284 = vmatprep.subr.bf16.mxu0 0
        %1285 = vmatpush1.bf16.msra.mxu0 0
        %1286 = vmatprep.subr.bf16.mxu0 0
        %1287 = vmatpush1.bf16.msra.mxu0 0
        %1288 = vmatprep.subr.bf16.mxu0 0
        %1289 = vmatpush1.bf16.msra.mxu0 0
        %1290 = vmatprep.subr.bf16.mxu0 0
        %1291 = vmatpush1.bf16.msra.mxu0 0
        %1292 = vmatprep.subr.bf16.mxu0 0
        %1293 = vmatpush1.bf16.msra.mxu0 0
        %1294 = vmatprep.subr.bf16.mxu0 0
        %1295 = vmatpush1.bf16.msra.mxu0 0
        %1296 = vmatprep.subr.bf16.mxu0 0
        %1297 = vmatpush1.bf16.msra.mxu0 0
        %1298 = vmatprep.subr.bf16.mxu0 0
        %1299 = vmatpush1.bf16.msra.mxu0 0
        %1300 = vmatprep.subr.bf16.mxu0 0
        %1301 = vmatpush1.bf16.msra.mxu0 0
        %1302 = vmatprep.subr.bf16.mxu0 0
        %1303 = vmatpush1.bf16.msra.mxu0 0
        %1304 = vmatprep.mubr.bf16.mxu0 0
        %1305 = vmatmul.mubr.bf16.gmra.mrb[0].mxu0 %v1267
        %v1306 = vpop.f32.mrb[0].mxu0
        %v1307 = vadd.f32 0.0, %v1306
        %v1308 = vpop.f32.mrb[0].mxu0
        %v1309 = vpop.f32.mrb[0].mxu0
        %v1310 = vpop.f32.mrb[0].mxu0
        %1311 = vdwg.mxu0
        %1313 = vrot.lane.b32.xlu0 %v1211, 64
        %v1314 = vpop.permute.xlu0 %1313
        %v1316 = vsel %vm972, %v1207, 0
        %v1319 = vsel %vm1219, %v1314, 0
        %1321 = vmatprep.subr.bf16.mxu0 0
        %1322 = vmatpush1.bf16.msra.mxu0 %v1319
        %1323 = vmatprep.subr.bf16.mxu0 0
        %1324 = vmatpush1.bf16.msra.mxu0 0
        %1325 = vmatprep.subr.bf16.mxu0 0
        %1326 = vmatpush1.bf16.msra.mxu0 0
        %1327 = vmatprep.subr.bf16.mxu0 0
        %1328 = vmatpush1.bf16.msra.mxu0 0
        %1329 = vmatprep.subr.bf16.mxu0 0
        %1330 = vmatpush1.bf16.msra.mxu0 0
        %1331 = vmatprep.subr.bf16.mxu0 0
        %1332 = vmatpush1.bf16.msra.mxu0 0
        %1333 = vmatprep.subr.bf16.mxu0 0
        %1334 = vmatpush1.bf16.msra.mxu0 0
        %1335 = vmatprep.subr.bf16.mxu0 0
        %1336 = vmatpush1.bf16.msra.mxu0 0
        %1337 = vmatprep.subr.bf16.mxu0 0
        %1338 = vmatpush1.bf16.msra.mxu0 0
        %1339 = vmatprep.subr.bf16.mxu0 0
        %1340 = vmatpush1.bf16.msra.mxu0 0
        %1341 = vmatprep.subr.bf16.mxu0 0
        %1342 = vmatpush1.bf16.msra.mxu0 0
        %1343 = vmatprep.subr.bf16.mxu0 0
        %1344 = vmatpush1.bf16.msra.mxu0 0
        %1345 = vmatprep.subr.bf16.mxu0 0
        %1346 = vmatpush1.bf16.msra.mxu0 0
        %1347 = vmatprep.subr.bf16.mxu0 0
        %1348 = vmatpush1.bf16.msra.mxu0 0
        %1349 = vmatprep.subr.bf16.mxu0 0
        %1350 = vmatpush1.bf16.msra.mxu0 0
        %1351 = vmatprep.subr.bf16.mxu0 0
        %1352 = vmatpush1.bf16.msra.mxu0 0
        %1353 = vmatprep.mubr.bf16.mxu0 0
        %1354 = vmatmul.mubr.bf16.gmra.mrb[0].mxu0 %v1316
        %v1355 = vpop.f32.mrb[0].mxu0
        %v1356 = vadd.f32 0.0, %v1355
        %v1357 = vpop.f32.mrb[0].mxu0
        %v1358 = vpop.f32.mrb[0].mxu0
        %v1359 = vpop.f32.mrb[0].mxu0
        %1360 = vdwg.mxu0
        %1362 = vrot.lane.b32.xlu0 %v1212, 64
        %v1363 = vpop.permute.xlu0 %1362
        %v1365 = vsel %vm972, %v1208, 0
        %v1368 = vsel %vm1219, %v1363, 0
        %1370 = vmatprep.subr.bf16.mxu0 0
        %1371 = vmatpush1.bf16.msra.mxu0 %v1368
        %1372 = vmatprep.subr.bf16.mxu0 0
        %1373 = vmatpush1.bf16.msra.mxu0 0
        %1374 = vmatprep.subr.bf16.mxu0 0
        %1375 = vmatpush1.bf16.msra.mxu0 0
        %1376 = vmatprep.subr.bf16.mxu0 0
        %1377 = vmatpush1.bf16.msra.mxu0 0
        %1378 = vmatprep.subr.bf16.mxu0 0
        %1379 = vmatpush1.bf16.msra.mxu0 0
        %1380 = vmatprep.subr.bf16.mxu0 0
        %1381 = vmatpush1.bf16.msra.mxu0 0
        %1382 = vmatprep.subr.bf16.mxu0 0
        %1383 = vmatpush1.bf16.msra.mxu0 0
        %1384 = vmatprep.subr.bf16.mxu0 0
        %1385 = vmatpush1.bf16.msra.mxu0 0
        %1386 = vmatprep.subr.bf16.mxu0 0
        %1387 = vmatpush1.bf16.msra.mxu0 0
        %1388 = vmatprep.subr.bf16.mxu0 0
        %1389 = vmatpush1.bf16.msra.mxu0 0
        %1390 = vmatprep.subr.bf16.mxu0 0
        %1391 = vmatpush1.bf16.msra.mxu0 0
        %1392 = vmatprep.subr.bf16.mxu0 0
        %1393 = vmatpush1.bf16.msra.mxu0 0
        %1394 = vmatprep.subr.bf16.mxu0 0
        %1395 = vmatpush1.bf16.msra.mxu0 0
        %1396 = vmatprep.subr.bf16.mxu0 0
        %1397 = vmatpush1.bf16.msra.mxu0 0
        %1398 = vmatprep.subr.bf16.mxu0 0
        %1399 = vmatpush1.bf16.msra.mxu0 0
        %1400 = vmatprep.subr.bf16.mxu0 0
        %1401 = vmatpush1.bf16.msra.mxu0 0
        %1402 = vmatprep.mubr.bf16.mxu0 0
        %1403 = vmatmul.mubr.bf16.gmra.mrb[0].mxu0 %v1365
        %v1404 = vpop.f32.mrb[0].mxu0
        %v1405 = vadd.f32 0.0, %v1404
        %v1406 = vpop.f32.mrb[0].mxu0
        %v1407 = vpop.f32.mrb[0].mxu0
        %v1408 = vpop.f32.mrb[0].mxu0
        %1409 = vdwg.mxu0
        %1411 = vrot.lane.b32.xlu0 %v1307, 8
        %v1412 = vpop.permute.xlu0 %1411
        %1415 = vrot.lane.b32.xlu0 %v1356, 16
        %v1416 = vpop.permute.xlu0 %1415
        %1419 = vrot.lane.b32.xlu0 %v1405, 24
        %v1420 = vpop.permute.xlu0 %1419
        %v1422 = vsel %vm972, %v1258, %v1412
        %vm1423 = vcmask 130048
        %v1424 = vsel %vm1423, %v1422, %v1416
        %vm1425 = vcmask 195584
        %v1426 = vsel %vm1425, %v1424, %v1420
        %v1427 = vpack.c.bf16 %v1426, %v1426
        %v1428 = vld [vmem:[#allocation11] sm:$0xf]
        %v1429 = vld [vmem:[#allocation11 + $0x4] sm:$0xf]
        %v1430 = vld [vmem:[#allocation11 + $0x8] sm:$0xf]
        %v1431 = vld [vmem:[#allocation11 + $0xc] sm:$0xf]
        %v1432 = vld [vmem:[#allocation13] sm:$0x1]
        %v1434 = vlaneseq
        %v1435 = vshrl.u32 %v1434, 7
        %v1436 = vsub.s32 0, %v1435
        %v1437 = vrot.slane %v1432, %v1436
        %v1443 = vunpack.c.l.b16 %v1428
        %v1444 = vunpack.c.l.b16 %v1429
        %v1445 = vunpack.c.l.b16 %v1430
        %v1446 = vunpack.c.l.b16 %v1431
        %v1447 = vpack.c.b16 %v1444, %v1443
        %v1448 = vpack.c.b16 %v1446, %v1445
        %v1452 = vsel %vm719, %v1427, 0
        %1454 = vmatprep.subr.bf16.mxu0 0
        %1455 = vmatpush1.bf16.msra.mxu0 %v1447
        %1456 = vmatprep.subr.bf16.mxu0 0
        %1457 = vmatpush1.bf16.msra.mxu0 %v1448
        %1458 = vmatprep.subr.bf16.mxu0 0
        %1459 = vmatpush1.bf16.msra.mxu0 0
        %1460 = vmatprep.subr.bf16.mxu0 0
        %1461 = vmatpush1.bf16.msra.mxu0 0
        %1462 = vmatprep.subr.bf16.mxu0 0
        %1463 = vmatpush1.bf16.msra.mxu0 0
        %1464 = vmatprep.subr.bf16.mxu0 0
        %1465 = vmatpush1.bf16.msra.mxu0 0
        %1466 = vmatprep.subr.bf16.mxu0 0
        %1467 = vmatpush1.bf16.msra.mxu0 0
        %1468 = vmatprep.subr.bf16.mxu0 0
        %1469 = vmatpush1.bf16.msra.mxu0 0
        %1470 = vmatprep.subr.bf16.mxu0 0
        %1471 = vmatpush1.bf16.msra.mxu0 0
        %1472 = vmatprep.subr.bf16.mxu0 0
        %1473 = vmatpush1.bf16.msra.mxu0 0
        %1474 = vmatprep.subr.bf16.mxu0 0
        %1475 = vmatpush1.bf16.msra.mxu0 0
        %1476 = vmatprep.subr.bf16.mxu0 0
        %1477 = vmatpush1.bf16.msra.mxu0 0
        %1478 = vmatprep.subr.bf16.mxu0 0
        %1479 = vmatpush1.bf16.msra.mxu0 0
        %1480 = vmatprep.subr.bf16.mxu0 0
        %1481 = vmatpush1.bf16.msra.mxu0 0
        %1482 = vmatprep.subr.bf16.mxu0 0
        %1483 = vmatpush1.bf16.msra.mxu0 0
        %1484 = vmatprep.subr.bf16.mxu0 0
        %1485 = vmatpush1.bf16.msra.mxu0 0
        %1486 = vmatprep.mubr.bf16.mxu0 0
        %1487 = vmatmul.mubr.bf16.gmra.mrb[0].mxu0 %v1452
        %v1488 = vpop.f32.mrb[0].mxu0
        %v1489 = vadd.f32 %v1437, %v1488
        %v1490 = vpop.f32.mrb[0].mxu0
        %v1491 = vpop.f32.mrb[0].mxu0
        %v1492 = vpop.f32.mrb[0].mxu0
        %1493 = vdwg.mxu0
        %v1494 = vld [vmem:[#allocation20] sm:$0x1]
        %v1495 = vld [vmem:[#allocation22] sm:$0x1]
        %v1496 = vsel %vm719, %v1489, 0.0
        %1497 = vadd.xlane.f32.xlu0 %v1496
        %v1498 = vpop.xlane.xlu0 %1497
        %v1499 = vrcp.pop 32.0
        %v1500 = vmul.f32 %v1498, %v1499
        %v1501 = vsub.f32 %v1489, %v1500
        %v1502 = vmul.f32 %v1501, %v1501
        %v1503 = vsel %vm719, %v1502, 0.0
        %1504 = vadd.xlane.f32.xlu0 %v1503
        %v1505 = vpop.xlane.xlu0 %1504
        %v1506 = vmul.f32 %v1505, %v1499
        %v1507 = vadd.f32 %v1506, 1e-05
        %v1508 = vrsqrt.pop %v1507
        %v1509 = vmul.f32 %v1501, %v1508
        %v1511 = vlaneseq
        %v1512 = vshrl.u32 %v1511, 7
        %v1513 = vsub.s32 0, %v1512
        %v1514 = vrot.slane %v1494, %v1513
        %v1516 = vmul.f32 %v1509, %v1514
        %v1518 = vlaneseq
        %v1519 = vshrl.u32 %v1518, 7
        %v1520 = vsub.s32 0, %v1519
        %v1521 = vrot.slane %v1495, %v1520
        %v1523 = vadd.f32 %v1516, %v1521
        %v1524 = vadd.f32 %v1523, %v694
        %v1525 = vpack.c.bf16 %v1524, %v1524
        %v1526 = vld [vmem:[#allocation14] sm:$0xff]
        %v1527 = vld [vmem:[#allocation14 + $0x8] sm:$0xff]
        %v1528 = vld [vmem:[#allocation14 + $0x10] sm:$0xff]
        %v1529 = vld [vmem:[#allocation14 + $0x18] sm:$0xff]
        %v1530 = vld [vmem:[#allocation16] sm:$0x3]
        %v1532 = vlaneseq
        %v1533 = vshrl.u32 %v1532, 7
        %v1534 = vsub.s32 0, %v1533
        %v1535 = vrot.slane %v1530, %v1534
        %v1536 = vlaneseq
        %v1537 = vshrl.u32 %v1536, 7
        %v1538 = vsub.s32 1, %v1537
        %v1539 = vrot.slane %v1530, %v1538
        %v1546 = vunpack.c.l.b16 %v1526
        %v1547 = vunpack.c.h.b16 %v1526
        %v1548 = vunpack.c.l.b16 %v1527
        %v1549 = vunpack.c.h.b16 %v1527
        %v1550 = vunpack.c.l.b16 %v1528
        %v1551 = vunpack.c.h.b16 %v1528
        %v1552 = vunpack.c.l.b16 %v1529
        %v1553 = vunpack.c.h.b16 %v1529
        %v1554 = vpack.c.b16 %v1548, %v1546
        %v1555 = vpack.c.b16 %v1549, %v1547
        %v1556 = vpack.c.b16 %v1552, %v1550
        %v1557 = vpack.c.b16 %v1553, %v1551
        %v1563 = vsel %vm719, %v1525, 0
        %1565 = vmatprep.subr.bf16.mxu0 %v1555
        %1566 = vmatpush1.bf16.msra.mxu0 %v1554
        %1567 = vmatprep.subr.bf16.mxu0 %v1557
        %1568 = vmatpush1.bf16.msra.mxu0 %v1556
        %1569 = vmatprep.subr.bf16.mxu0 0
        %1570 = vmatpush1.bf16.msra.mxu0 0
        %1571 = vmatprep.subr.bf16.mxu0 0
        %1572 = vmatpush1.bf16.msra.mxu0 0
        %1573 = vmatprep.subr.bf16.mxu0 0
        %1574 = vmatpush1.bf16.msra.mxu0 0
        %1575 = vmatprep.subr.bf16.mxu0 0
        %1576 = vmatpush1.bf16.msra.mxu0 0
        %1577 = vmatprep.subr.bf16.mxu0 0
        %1578 = vmatpush1.bf16.msra.mxu0 0
        %1579 = vmatprep.subr.bf16.mxu0 0
        %1580 = vmatpush1.bf16.msra.mxu0 0
        %1581 = vmatprep.subr.bf16.mxu0 0
        %1582 = vmatpush1.bf16.msra.mxu0 0
        %1583 = vmatprep.subr.bf16.mxu0 0
        %1584 = vmatpush1.bf16.msra.mxu0 0
        %1585 = vmatprep.subr.bf16.mxu0 0
        %1586 = vmatpush1.bf16.msra.mxu0 0
        %1587 = vmatprep.subr.bf16.mxu0 0
        %1588 = vmatpush1.bf16.msra.mxu0 0
        %1589 = vmatprep.subr.bf16.mxu0 0
        %1590 = vmatpush1.bf16.msra.mxu0 0
        %1591 = vmatprep.subr.bf16.mxu0 0
        %1592 = vmatpush1.bf16.msra.mxu0 0
        %1593 = vmatprep.subr.bf16.mxu0 0
        %1594 = vmatpush1.bf16.msra.mxu0 0
        %1595 = vmatprep.subr.bf16.mxu0 0
        %1596 = vmatpush1.bf16.msra.mxu0 0
        %1597 = vmatprep.mubr.bf16.mxu0 0
        %1598 = vmatmul.mubr.bf16.gmra.mrb[0].mxu0 %v1563
        %v1599 = vpop.f32.mrb[0].mxu0
        %v1600 = vadd.f32 %v1535, %v1599
        %v1601 = vpop.f32.mrb[0].mxu0
        %v1602 = vadd.f32 %v1539, %v1601
        %v1603 = vpop.f32.mrb[0].mxu0
        %v1604 = vpop.f32.mrb[0].mxu0
        %1605 = vdwg.mxu0
        %v1606 = vsub.f32 0.0, %v1600
        %v1607 = vmul.f32 %v1606, 1.442695
        %v1608 = vpow.pop %v1607
        %v1609 = vadd.f32 %v1608, 1.0
        %v1610 = vrcp.pop %v1609
        %v1611 = vmul.f32 %v1600, %v1610
        %v1612 = vmul.f32 %v1611, %v1602
        %v1613 = vpack.c.bf16 %v1612, %v1612
        %v1614 = vld [vmem:[#allocation17] sm:$0xf]
        %v1615 = vld [vmem:[#allocation17 + $0x4] sm:$0xf]
        %v1616 = vld [vmem:[#allocation17 + $0x8] sm:$0xf]
        %v1617 = vld [vmem:[#allocation17 + $0xc] sm:$0xf]
        %v1618 = vld [vmem:[#allocation17 + $0x10] sm:$0xf]
        %v1619 = vld [vmem:[#allocation17 + $0x14] sm:$0xf]
        %v1620 = vld [vmem:[#allocation17 + $0x18] sm:$0xf]
        %v1621 = vld [vmem:[#allocation17 + $0x1c] sm:$0xf]
        %v1622 = vld [vmem:[#allocation17 + $0x20] sm:$0xf]
        %v1623 = vld [vmem:[#allocation17 + $0x24] sm:$0xf]
        %v1624 = vld [vmem:[#allocation17 + $0x28] sm:$0xf]
        %v1625 = vld [vmem:[#allocation17 + $0x2c] sm:$0xf]
        %v1626 = vld [vmem:[#allocation17 + $0x30] sm:$0xf]
        %v1627 = vld [vmem:[#allocation17 + $0x34] sm:$0xf]
        %v1628 = vld [vmem:[#allocation17 + $0x38] sm:$0xf]
        %v1629 = vld [vmem:[#allocation17 + $0x3c] sm:$0xf]
        %v1630 = vld [vmem:[#allocation19] sm:$0x1]
        %v1632 = vlaneseq
        %v1633 = vshrl.u32 %v1632, 7
        %v1634 = vsub.s32 0, %v1633
        %v1635 = vrot.slane %v1630, %v1634
        %v1653 = vunpack.c.l.b16 %v1614
        %v1654 = vunpack.c.l.b16 %v1615
        %v1655 = vunpack.c.l.b16 %v1616
        %v1656 = vunpack.c.l.b16 %v1617
        %v1657 = vunpack.c.l.b16 %v1618
        %v1658 = vunpack.c.l.b16 %v1619
        %v1659 = vunpack.c.l.b16 %v1620
        %v1660 = vunpack.c.l.b16 %v1621
        %v1661 = vunpack.c.l.b16 %v1622
        %v1662 = vunpack.c.l.b16 %v1623
        %v1663 = vunpack.c.l.b16 %v1624
        %v1664 = vunpack.c.l.b16 %v1625
        %v1665 = vunpack.c.l.b16 %v1626
        %v1666 = vunpack.c.l.b16 %v1627
        %v1667 = vunpack.c.l.b16 %v1628
        %v1668 = vunpack.c.l.b16 %v1629
        %v1669 = vpack.c.b16 %v1654, %v1653
        %v1670 = vpack.c.b16 %v1656, %v1655
        %v1671 = vpack.c.b16 %v1658, %v1657
        %v1672 = vpack.c.b16 %v1660, %v1659
        %v1673 = vpack.c.b16 %v1662, %v1661
        %v1674 = vpack.c.b16 %v1664, %v1663
        %v1675 = vpack.c.b16 %v1666, %v1665
        %v1676 = vpack.c.b16 %v1668, %v1667
        %1685 = vmatprep.subr.bf16.mxu0 0
        %1686 = vmatpush1.bf16.msra.mxu0 %v1669
        %1687 = vmatprep.subr.bf16.mxu0 0
        %1688 = vmatpush1.bf16.msra.mxu0 %v1670
        %1689 = vmatprep.subr.bf16.mxu0 0
        %1690 = vmatpush1.bf16.msra.mxu0 %v1671
        %1691 = vmatprep.subr.bf16.mxu0 0
        %1692 = vmatpush1.bf16.msra.mxu0 %v1672
        %1693 = vmatprep.subr.bf16.mxu0 0
        %1694 = vmatpush1.bf16.msra.mxu0 %v1673
        %1695 = vmatprep.subr.bf16.mxu0 0
        %1696 = vmatpush1.bf16.msra.mxu0 %v1674
        %1697 = vmatprep.subr.bf16.mxu0 0
        %1698 = vmatpush1.bf16.msra.mxu0 %v1675
        %1699 = vmatprep.subr.bf16.mxu0 0
        %1700 = vmatpush1.bf16.msra.mxu0 %v1676
        %1701 = vmatprep.subr.bf16.mxu0 0
        %1702 = vmatpush1.bf16.msra.mxu0 0
        %1703 = vmatprep.subr.bf16.mxu0 0
        %1704 = vmatpush1.bf16.msra.mxu0 0
        %1705 = vmatprep.subr.bf16.mxu0 0
        %1706 = vmatpush1.bf16.msra.mxu0 0
        %1707 = vmatprep.subr.bf16.mxu0 0
        %1708 = vmatpush1.bf16.msra.mxu0 0
        %1709 = vmatprep.subr.bf16.mxu0 0
        %1710 = vmatpush1.bf16.msra.mxu0 0
        %1711 = vmatprep.subr.bf16.mxu0 0
        %1712 = vmatpush1.bf16.msra.mxu0 0
        %1713 = vmatprep.subr.bf16.mxu0 0
        %1714 = vmatpush1.bf16.msra.mxu0 0
        %1715 = vmatprep.subr.bf16.mxu0 0
        %1716 = vmatpush1.bf16.msra.mxu0 0
        %1717 = vmatprep.mubr.bf16.mxu0 0
        %1718 = vmatmul.mubr.bf16.gmra.mrb[0].mxu0 %v1613
        %v1719 = vpop.f32.mrb[0].mxu0
        %v1720 = vadd.f32 %v1635, %v1719
        %v1721 = vpop.f32.mrb[0].mxu0
        %v1722 = vpop.f32.mrb[0].mxu0
        %v1723 = vpop.f32.mrb[0].mxu0
        %1724 = vdwg.mxu0
        %v1725 = vld [vmem:[#allocation23] sm:$0x1]
        %v1726 = vld [vmem:[#allocation25] sm:$0x1]
        %v1727 = vsel %vm719, %v1720, 0.0
        %1728 = vadd.xlane.f32.xlu0 %v1727
        %v1729 = vpop.xlane.xlu0 %1728
        %v1730 = vmul.f32 %v1729, %v1499
        %v1731 = vsub.f32 %v1720, %v1730
        %v1732 = vmul.f32 %v1731, %v1731
        %v1733 = vsel %vm719, %v1732, 0.0
        %1734 = vadd.xlane.f32.xlu0 %v1733
        %v1735 = vpop.xlane.xlu0 %1734
        %v1736 = vmul.f32 %v1735, %v1499
        %v1737 = vadd.f32 %v1736, 1e-05
        %v1738 = vrsqrt.pop %v1737
        %v1739 = vmul.f32 %v1731, %v1738
        %v1741 = vlaneseq
        %v1742 = vshrl.u32 %v1741, 7
        %v1743 = vsub.s32 0, %v1742
        %v1744 = vrot.slane %v1725, %v1743
        %v1746 = vmul.f32 %v1739, %v1744
        %v1748 = vlaneseq
        %v1749 = vshrl.u32 %v1748, 7
        %v1750 = vsub.s32 0, %v1749
        %v1751 = vrot.slane %v1726, %v1750
        %v1753 = vadd.f32 %v1746, %v1751
        %v1754 = vadd.f32 %v1753, %v1524
        %1755 = vst.msk [vmem:[%s692] sm:$0xff] %vm719, %v1754
        %s1756 = sand.u32 %s367, 1
        %s1757 = scalar_lea.sflag [#allocation4], %s1756
        %s1758 = sand.u32 %s367, 1
        %s1759 = smul.addr %s1758, 8
        %s1760 = scalar_lea.vmem [#allocation26], %s1759
        // Predicated region
        $region141: #{tpu_custom_call.1} parent=79 // pred_check
          %p1761 = pneg %p377
        $region142: #{tpu_custom_call.1} parent=79 // pred_check_branch
          %1763 = sbr.rel (%p1761) target = $region144
        $region143: #{tpu_custom_call.1} parent=79 // pred_region
          %s1765 = ssub.s32 128, 128
          %1766 = vsyncadd %s1757, %s1765
          %s1767 = smul.addr %s39, 128
          %s1768 = scalar_lea.hbm %s15, %s1767
          %s1770 = sshll.u32 %s1760, 4
          %s1771 = int_to_ptr.vmem [resolvable:$true] %s1770
          %1773 = dma.vmem_to_hbm [thread:$0]  %s1771, 128, %s1768, %s1757
        $region144: #{tpu_custom_call.1} parent=79 // pred_fallthru
          _
      $region80: #{tpu_custom_call.1} parent=5 // pred_fallthru
        _
      %p1774 = scmp.le.s32.totalorder 2, %s34
      // Predicated region
      $region145: #{tpu_custom_call.1} parent=5 // pred_check
        %p1775 = pneg %p1774
      $region146: #{tpu_custom_call.1} parent=5 // pred_check_branch
        %1777 = sbr.rel (%p1775) target = $region148
      $region147: #{tpu_custom_call.1} parent=5 // pred_region
        %s1778 = ssub.s32 %s34, 2
        // Predicated region
        $region149: #{tpu_custom_call.1} parent=147 // pred_check
          %p1779 = pneg %p383
        $region150: #{tpu_custom_call.1} parent=147 // pred_check_branch
          %1781 = sbr.rel (%p1779) target = $region152
        $region151: #{tpu_custom_call.1} parent=147 // pred_region
          %s1782 = sand.u32 %s368, 1
          %s1783 = scalar_lea.sflag [#allocation4], %s1782
          %s1784 = sand.u32 %s368, 1
          %s1785 = smul.addr %s1784, 8
          %s1786 = scalar_lea.vmem [#allocation26], %s1785
          %1787 = dma.done %s1783, 128
        $region152: #{tpu_custom_call.1} parent=147 // pred_fallthru
          _
      $region148: #{tpu_custom_call.1} parent=5 // pred_fallthru
        _
    $region6: #{tpu_custom_call.1} parent=1 // loop_footer
      %s38 = sadd.s32 1, %s34
    $region7: #{tpu_custom_call.1} parent=1 // loop_footer_branch
      %33 = sbr.rel target = $region3
    $region8: #{tpu_custom_call.1} parent=1 // loop_exit
      _
    %1788 = vsyncpa [#allocation3], 1
    %s1789 = scalar_lea.sflag [#allocation3], 1
    %1790 = vsyncpa %s1789, 1
    %1791 = vsyncpa [#allocation6], 1
    %1792 = vsyncpa [#allocation9], 1
    %1793 = vsyncpa [#allocation12], 1
    %1794 = vsyncpa [#allocation15], 1
    %1795 = vsyncpa [#allocation18], 1
    %1796 = vsyncpa [#allocation21], 1
    %1797 = vsyncpa [#allocation24], 1
    %1798 = vsyncpa [#allocation4], 1
    %s1799 = scalar_lea.sflag [#allocation4], 1
    %1800 = vsyncpa %s1799, 1

</llo_original>
